<compile_context>
chip_gen: v5e
topology: v5e:2x2
jax: 0.10.0
libtpu: 0.0.40
codegen_flags: <defaults>
</compile_context>

<pallas_src>
import math

import jax
import jax.numpy as jnp
from jax.experimental import pallas as pl
from jax.experimental.pallas import tpu as pltpu

# ----------------------- configuration (matches the PyTorch module) ----------
INPUT_SIZE = 4
NUM_CLASSES = 2
D_MODEL = 32
NUM_HEADS = 4
FF_HIDDEN = 64
NUM_LAYERS = 2            # nn.TransformerEncoder(..., num_layers=2)
MAX_LEN = 128             # time-encoding table length (lane-sized)
B, T = 2, 8
R = B * T
HEAD_DIM = D_MODEL // NUM_HEADS
HALF = D_MODEL // 2
LN_EPS = 1e-5

# fused-QKV lane sections (128-aligned so the q/k/v split is free vreg selection)
QKV_SEC = 128
QKV_W = 3 * QKV_SEC                              # 384

# out_proj / linear1 weight slab lane sections: out_proj at 0, linear1 at 128
OL1_W = 256

# bias / LayerNorm / small-vector slab layout: one row per vector, 384 lanes wide
ROWS_PER_LAYER = 8        # [qkv_bias, out_b, ln1_w, ln1_b, lin1_b, lin2_b, ln2_w, ln2_b]
CLS_ROW = NUM_LAYERS * ROWS_PER_LAYER            # 16 : classifier bias
EMB_ROW = CLS_ROW + 1                            # 17 : input-embedding weight rows (6)
VEC_ROWS = 24                                    # padded to a multiple of 8 sublanes


# --------------------------------- kernel ------------------------------------
def proformer_kernel(data_ref, labels_ref, times_ref, pe_ref,
                     wqkv_ref, w_ol1_ref, w64_ref, vec_ref, o_ref):
    f32 = jnp.float32

    def layer_norm(y, w, b):
        mu = jnp.mean(y, axis=-1, keepdims=True)
        var = jnp.mean(y * y, axis=-1, keepdims=True) - mu * mu
        s = w * jax.lax.rsqrt(var + LN_EPS)                          # (R, D)
        return y * s + (b - mu * s)

    # ---- input embedding + time encoding -------------------------------------
    # time encoding == one_hot(times) @ pe ; pe already padded to D_MODEL lanes and
    # carries the input-embedding bias in lanes [0:HALF] of every row.
    t_idx = times_ref[...]                                           # (R, 1) int32
    lanes = jax.lax.broadcasted_iota(jnp.int32, (R, MAX_LEN), 1)
    onehot = (lanes == t_idx).astype(f32)                            # (R, MAX_LEN)
    x = jnp.dot(onehot, pe_ref[...], preferred_element_type=f32)     # (R, D)

    wd = vec_ref[EMB_ROW:EMB_ROW + INPUT_SIZE, 0:D_MODEL]            # (4, D)
    wl = vec_ref[EMB_ROW + INPUT_SIZE:EMB_ROW + INPUT_SIZE + NUM_CLASSES, 0:D_MODEL]
    x = (x + jnp.dot(data_ref[...], wd, preferred_element_type=f32)
           + jnp.dot(labels_ref[...], wl, preferred_element_type=f32))

    # ---- transformer encoder layers (post-LN, ReLU FF, eval-mode dropout) ----
    for l in range(NUM_LAYERS):
        vb = l * ROWS_PER_LAYER
        w_ol1 = w_ol1_ref[l]                                         # (D, 256)

        # fused q/k/v projection: one matmul, 128-aligned output sections,
        # 1/sqrt(head_dim) already folded into the q weights/bias.
        qkv = (jnp.dot(x, wqkv_ref[l], preferred_element_type=f32)
               + vec_ref[vb:vb + 1, :])                              # (R, 384)
        q3 = qkv[:, 0:D_MODEL].reshape(B, T, D_MODEL)
        k3 = qkv[:, QKV_SEC:QKV_SEC + D_MODEL].reshape(B, T, D_MODEL)
        v3 = qkv[:, 2 * QKV_SEC:2 * QKV_SEC + D_MODEL].reshape(B, T, D_MODEL)

        ctx_heads = []
        for h in range(NUM_HEADS):
            sl = slice(h * HEAD_DIM, (h + 1) * HEAD_DIM)
            s = jnp.einsum('btd,bsd->bts', q3[:, :, sl], k3[:, :, sl],
                           preferred_element_type=f32)               # (B, T, T)
            s = s - jnp.max(s, axis=-1, keepdims=True)
            e = jnp.exp(s)
            p = e * pl.reciprocal(jnp.sum(e, axis=-1, keepdims=True), approx=True)
            ctx_heads.append(jnp.einsum('bts,bsd->btd', p, v3[:, :, sl],
                                        preferred_element_type=f32))  # (B, T, Hd)
        ctx = jnp.concatenate(ctx_heads, axis=-1).reshape(R, D_MODEL)

        attn = (jnp.dot(ctx, w_ol1[:, 0:D_MODEL], preferred_element_type=f32)
                + vec_ref[vb + 1:vb + 2, 0:D_MODEL])
        x = layer_norm(x + attn,
                       vec_ref[vb + 2:vb + 3, 0:D_MODEL],
                       vec_ref[vb + 3:vb + 4, 0:D_MODEL])

        h1 = jnp.maximum(
            jnp.dot(x, w_ol1[:, 128:128 + FF_HIDDEN], preferred_element_type=f32)
            + vec_ref[vb + 4:vb + 5, 0:FF_HIDDEN], 0.0)              # (R, FF)
        ff = (jnp.dot(h1, w64_ref[l], preferred_element_type=f32)
              + vec_ref[vb + 5:vb + 6, 0:D_MODEL])
        x = layer_norm(x + ff,
                       vec_ref[vb + 6:vb + 7, 0:D_MODEL],
                       vec_ref[vb + 7:vb + 8, 0:D_MODEL])

    # ---- classifier on the last token of each sequence ------------------------
    last = x.reshape(B, T, D_MODEL)[:, T - 1, :]                     # (B, D)
    clsw = w64_ref[NUM_LAYERS][0:D_MODEL, 0:NUM_CLASSES]             # (D, NC)
    o_ref[...] = (jnp.dot(last, clsw, preferred_element_type=f32)
                  + vec_ref[CLS_ROW:CLS_ROW + 1, 0:NUM_CLASSES])


# ------------------------------- parameters -----------------------------------
def get_freq_encoding(max_len, d_model):
    half = d_model // 2
    position = jnp.arange(max_len, dtype=jnp.float32)[:, None]       # (L, 1)
    div_term = 2.0 * math.pi / jnp.arange(2, half + 1, 2, dtype=jnp.float32)
    pe = jnp.zeros((max_len, half), dtype=jnp.float32)
    pe = pe.at[:, 0::2].set(jnp.sin(position * div_term))
    pe = pe.at[:, 1::2].set(jnp.cos(position * div_term))
    return pe                                                        # (L, half)


def init_params(key):
    ks = iter(jax.random.split(key, 32))

    def lin_w(shape, fan_in):
        bound = 1.0 / math.sqrt(fan_in)
        return jax.random.uniform(next(ks), shape, jnp.float32, -bound, bound)

    return {
        'pe': get_freq_encoding(MAX_LEN, D_MODEL),
        # PyTorch-layout (out, in) weights; repacked ONCE in prepare_params().
        'we': lin_w((HALF, INPUT_SIZE + NUM_CLASSES), INPUT_SIZE + NUM_CLASSES),
        'be': lin_w((1, HALF), INPUT_SIZE + NUM_CLASSES),
        'qkv_w': lin_w((NUM_LAYERS, 3 * D_MODEL, D_MODEL), D_MODEL),
        'qkv_b': jnp.zeros((NUM_LAYERS, 1, 3 * D_MODEL), jnp.float32),
        'out_w': lin_w((NUM_LAYERS, D_MODEL, D_MODEL), D_MODEL),
        'out_b': jnp.zeros((NUM_LAYERS, 1, D_MODEL), jnp.float32),
        'ln1_w': jnp.ones((NUM_LAYERS, 1, D_MODEL), jnp.float32),
        'ln1_b': jnp.zeros((NUM_LAYERS, 1, D_MODEL), jnp.float32),
        'lin1_w': lin_w((NUM_LAYERS, FF_HIDDEN, D_MODEL), D_MODEL),
        'lin1_b': lin_w((NUM_LAYERS, 1, FF_HIDDEN), D_MODEL),
        'lin2_w': lin_w((NUM_LAYERS, D_MODEL, FF_HIDDEN), FF_HIDDEN),
        'lin2_b': lin_w((NUM_LAYERS, 1, D_MODEL), FF_HIDDEN),
        'ln2_w': jnp.ones((NUM_LAYERS, 1, D_MODEL), jnp.float32),
        'ln2_b': jnp.zeros((NUM_LAYERS, 1, D_MODEL), jnp.float32),
        'cls_w': lin_w((NUM_CLASSES, D_MODEL), D_MODEL),
        'cls_b': lin_w((1, NUM_CLASSES), D_MODEL),
    }


def prepare_params(p):
    """One-time repack of PyTorch-layout params into the kernel's packed slabs."""
    f32 = jnp.float32
    scale = 1.0 / math.sqrt(HEAD_DIM)

    # PE table: time encoding into lanes [HALF:D_MODEL], embedding bias folded into every row.
    be_pad = jnp.pad(p['be'], ((0, 0), (0, D_MODEL - HALF)))             # (1, D)
    pe = jnp.concatenate(
        [jnp.zeros((MAX_LEN, HALF), f32), p['pe']], axis=-1) + be_pad    # (L, D)

    # fused q/k/v weights (in, out), q pre-scaled, sections at 0 / 128 / 256 lanes.
    qw = jnp.transpose(p['qkv_w'][:, 0:D_MODEL, :], (0, 2, 1)) * scale   # (L, D, D)
    kw = jnp.transpose(p['qkv_w'][:, D_MODEL:2 * D_MODEL, :], (0, 2, 1))
    vw = jnp.transpose(p['qkv_w'][:, 2 * D_MODEL:, :], (0, 2, 1))
    wqkv = jnp.zeros((NUM_LAYERS, D_MODEL, QKV_W), f32)
    wqkv = wqkv.at[:, :, 0:D_MODEL].set(qw)
    wqkv = wqkv.at[:, :, QKV_SEC:QKV_SEC + D_MODEL].set(kw)
    wqkv = wqkv.at[:, :, 2 * QKV_SEC:2 * QKV_SEC + D_MODEL].set(vw)

    qb = p['qkv_b'][:, 0, 0:D_MODEL] * scale                             # (L, D)
    kb = p['qkv_b'][:, 0, D_MODEL:2 * D_MODEL]
    vb = p['qkv_b'][:, 0, 2 * D_MODEL:]

    # out_proj + linear1 weight slab (both contract over D_MODEL), 128-aligned sections.
    w_ol1 = jnp.zeros((NUM_LAYERS, D_MODEL, OL1_W), f32)
    w_ol1 = w_ol1.at[:, :, 0:D_MODEL].set(jnp.transpose(p['out_w'], (0, 2, 1)))
    w_ol1 = w_ol1.at[:, :, 128:128 + FF_HIDDEN].set(jnp.transpose(p['lin1_w'], (0, 2, 1)))

    # linear2 (per layer) + zero-padded classifier weight, all (64, 32) blocks.
    w64 = jnp.zeros((NUM_LAYERS + 1, FF_HIDDEN, D_MODEL), f32)
    w64 = w64.at[0:NUM_LAYERS].set(jnp.transpose(p['lin2_w'], (0, 2, 1)))
    w64 = w64.at[NUM_LAYERS, 0:D_MODEL, 0:NUM_CLASSES].set(p['cls_w'].T)

    # bias / LayerNorm / small-vector slab: one row per vector.
    vec = jnp.zeros((VEC_ROWS, QKV_W), f32)
    for l in range(NUM_LAYERS):
        r = l * ROWS_PER_LAYER
        vec = vec.at[r, 0:D_MODEL].set(qb[l])
        vec = vec.at[r, QKV_SEC:QKV_SEC + D_MODEL].set(kb[l])
        vec = vec.at[r, 2 * QKV_SEC:2 * QKV_SEC + D_MODEL].set(vb[l])
        vec = vec.at[r + 1, 0:D_MODEL].set(p['out_b'][l, 0])
        vec = vec.at[r + 2, 0:D_MODEL].set(p['ln1_w'][l, 0])
        vec = vec.at[r + 3, 0:D_MODEL].set(p['ln1_b'][l, 0])
        vec = vec.at[r + 4, 0:FF_HIDDEN].set(p['lin1_b'][l, 0])
        vec = vec.at[r + 5, 0:D_MODEL].set(p['lin2_b'][l, 0])
        vec = vec.at[r + 6, 0:D_MODEL].set(p['ln2_w'][l, 0])
        vec = vec.at[r + 7, 0:D_MODEL].set(p['ln2_b'][l, 0])
    vec = vec.at[CLS_ROW, 0:NUM_CLASSES].set(p['cls_b'][0])
    # input-embedding weight rows (data rows then label rows), padded to D_MODEL lanes.
    we_t = jnp.pad(p['we'].T, ((0, 0), (0, D_MODEL - HALF)))             # (IN+NC, D)
    vec = vec.at[EMB_ROW:EMB_ROW + INPUT_SIZE + NUM_CLASSES, 0:D_MODEL].set(we_t)

    return {'pe': pe, 'wqkv': wqkv, 'w_ol1': w_ol1, 'w64': w64, 'vec': vec}


# ------------------------------- JAX wrapper ----------------------------------
def proformer_forward(data, labels, times, kp):
    # Per-call glue is only free reshapes; everything else happens inside one pallas_call.
    data2 = data.reshape(R, INPUT_SIZE)
    labels2 = labels.reshape(R, NUM_CLASSES)
    times2 = times.reshape(R, 1).astype(jnp.int32)

    vmem = pl.BlockSpec(memory_space=pltpu.MemorySpace.VMEM)
    args = (data2, labels2, times2, kp['pe'], kp['wqkv'], kp['w_ol1'], kp['w64'], kp['vec'])
    return pl.pallas_call(
        proformer_kernel,
        out_shape=jax.ShapeDtypeStruct((B, NUM_CLASSES), jnp.float32),
        in_specs=[vmem] * len(args),
        out_specs=vmem,
    )(*args)


# ----------------------------------- main -------------------------------------
if __name__ == "__main__":
    key = jax.random.PRNGKey(0)
    kw_, kd, kl, kt = jax.random.split(key, 4)
    params = init_params(kw_)
    kparams = prepare_params(params)        # one-time weight repack (NOT per call)

    data = jax.random.normal(kd, (B, T, INPUT_SIZE), jnp.float32)
    labels = jax.nn.one_hot(
        jax.random.randint(kl, (B, T), 0, NUM_CLASSES), NUM_CLASSES, dtype=jnp.float32)
    times = jax.random.randint(kt, (B, T), 0, MAX_LEN)

    fwd = jax.jit(proformer_forward)
    out = jax.block_until_ready(fwd(data, labels, times, kparams))
    assert out.shape == (B, NUM_CLASSES)
    assert bool(jnp.all(jnp.isfinite(out)))
    # TODO(synk): dropout layers in TransformerEncoderLayer are treated as identity (eval mode).
    print("KERNEL_OK")
</pallas_src>

<mosaic_0001>
module attributes {stable_mosaic.version = 11 : i64} {
  func.func @proformer_kernel(%arg0: memref<16x4xf32, #tpu.memory_space<vmem>>, %arg1: memref<16x2xf32, #tpu.memory_space<vmem>>, %arg2: memref<16x1xi32, #tpu.memory_space<vmem>>, %arg3: memref<128x32xf32, #tpu.memory_space<vmem>>, %arg4: memref<2x32x384xf32, #tpu.memory_space<vmem>>, %arg5: memref<2x32x256xf32, #tpu.memory_space<vmem>>, %arg6: memref<3x64x32xf32, #tpu.memory_space<vmem>>, %arg7: memref<24x384xf32, #tpu.memory_space<vmem>>, %arg8: memref<2x2xf32, #tpu.memory_space<vmem>>) attributes {dimension_semantics = [], scalar_prefetch = 0 : i64, scratch_operands = 0 : i64, tpu.core_type = #tpu.core_type<tc>} {
    %c0 = arith.constant 0 : index
    %c0_0 = arith.constant 0 : index
    %0 = vector.load %arg2[%c0, %c0_0] : memref<16x1xi32, #tpu.memory_space<vmem>>, vector<16x1xi32>
    %1 = tpu.iota {dimensions = array<i32: 1>} : vector<16x128xi32>
    %2 = vector.broadcast %0 : vector<16x1xi32> to vector<16x128xi32>
    %3 = arith.cmpi eq, %1, %2 : vector<16x128xi32>
    %4 = arith.extui %3 : vector<16x128xi1> to vector<16x128xi32>
    %5 = arith.sitofp %4 : vector<16x128xi32> to vector<16x128xf32>
    %c0_1 = arith.constant 0 : index
    %c0_2 = arith.constant 0 : index
    %6 = vector.load %arg3[%c0_1, %c0_2] : memref<128x32xf32, #tpu.memory_space<vmem>>, vector<128x32xf32>
    %cst = arith.constant dense<0.000000e+00> : vector<16x32xf32>
    %7 = tpu.matmul %5, %6, %cst {dimension_numbers = #tpu.dot_dimension_numbers<[1], [0], [0], [1], [0, 0, 1, 1], [], []>} : vector<16x128xf32>, vector<128x32xf32>, vector<16x32xf32> -> vector<16x32xf32>
    %c17 = arith.constant 17 : index
    %c0_3 = arith.constant 0 : index
    %8 = vector.load %arg7[%c17, %c0_3] : memref<24x384xf32, #tpu.memory_space<vmem>>, vector<4x32xf32>
    %c21 = arith.constant 21 : index
    %c0_4 = arith.constant 0 : index
    %9 = vector.load %arg7[%c21, %c0_4] : memref<24x384xf32, #tpu.memory_space<vmem>>, vector<2x32xf32>
    %c0_5 = arith.constant 0 : index
    %c0_6 = arith.constant 0 : index
    %10 = vector.load %arg0[%c0_5, %c0_6] : memref<16x4xf32, #tpu.memory_space<vmem>>, vector<16x4xf32>
    %cst_7 = arith.constant dense<0.000000e+00> : vector<16x32xf32>
    %11 = tpu.matmul %10, %8, %cst_7 {dimension_numbers = #tpu.dot_dimension_numbers<[1], [0], [0], [1], [0, 0, 1, 1], [], []>} : vector<16x4xf32>, vector<4x32xf32>, vector<16x32xf32> -> vector<16x32xf32>
    %12 = arith.addf %7, %11 : vector<16x32xf32>
    %c0_8 = arith.constant 0 : index
    %c0_9 = arith.constant 0 : index
    %13 = vector.load %arg1[%c0_8, %c0_9] : memref<16x2xf32, #tpu.memory_space<vmem>>, vector<16x2xf32>
    %cst_10 = arith.constant dense<0.000000e+00> : vector<16x32xf32>
    %14 = tpu.matmul %13, %9, %cst_10 {dimension_numbers = #tpu.dot_dimension_numbers<[1], [0], [0], [1], [0, 0, 1, 1], [], []>} : vector<16x2xf32>, vector<2x32xf32>, vector<16x32xf32> -> vector<16x32xf32>
    %15 = arith.addf %12, %14 : vector<16x32xf32>
    %c0_11 = arith.constant 0 : index
    %c0_12 = arith.constant 0 : index
    %c0_13 = arith.constant 0 : index
    %16 = vector.load %arg5[%c0_11, %c0_12, %c0_13] : memref<2x32x256xf32, #tpu.memory_space<vmem>>, vector<1x32x256xf32>
    %17 = vector.shape_cast %16 : vector<1x32x256xf32> to vector<32x256xf32>
    %c0_14 = arith.constant 0 : index
    %c0_15 = arith.constant 0 : index
    %c0_16 = arith.constant 0 : index
    %18 = vector.load %arg4[%c0_14, %c0_15, %c0_16] : memref<2x32x384xf32, #tpu.memory_space<vmem>>, vector<1x32x384xf32>
    %19 = vector.shape_cast %18 : vector<1x32x384xf32> to vector<32x384xf32>
    %cst_17 = arith.constant dense<0.000000e+00> : vector<16x384xf32>
    %20 = tpu.matmul %15, %19, %cst_17 {dimension_numbers = #tpu.dot_dimension_numbers<[1], [0], [0], [1], [0, 0, 1, 1], [], []>} : vector<16x32xf32>, vector<32x384xf32>, vector<16x384xf32> -> vector<16x384xf32>
    %c0_18 = arith.constant 0 : index
    %c0_19 = arith.constant 0 : index
    %21 = vector.load %arg7[%c0_18, %c0_19] : memref<24x384xf32, #tpu.memory_space<vmem>>, vector<1x384xf32>
    %22 = vector.broadcast %21 : vector<1x384xf32> to vector<16x384xf32>
    %23 = arith.addf %20, %22 : vector<16x384xf32>
    %24 = vector.extract_strided_slice %23 {offsets = [0, 0], sizes = [16, 32], strides = [1, 1]} : vector<16x384xf32> to vector<16x32xf32>
    %25 = vector.shape_cast %24 : vector<16x32xf32> to vector<2x8x32xf32>
    %26 = vector.extract_strided_slice %23 {offsets = [0, 128], sizes = [16, 32], strides = [1, 1]} : vector<16x384xf32> to vector<16x32xf32>
    %27 = vector.shape_cast %26 : vector<16x32xf32> to vector<2x8x32xf32>
    %28 = vector.extract_strided_slice %23 {offsets = [0, 256], sizes = [16, 32], strides = [1, 1]} : vector<16x384xf32> to vector<16x32xf32>
    %29 = vector.shape_cast %28 : vector<16x32xf32> to vector<2x8x32xf32>
    %30 = vector.extract_strided_slice %25 {offsets = [0, 0, 0], sizes = [2, 8, 8], strides = [1, 1, 1]} : vector<2x8x32xf32> to vector<2x8x8xf32>
    %31 = vector.extract_strided_slice %27 {offsets = [0, 0, 0], sizes = [2, 8, 8], strides = [1, 1, 1]} : vector<2x8x32xf32> to vector<2x8x8xf32>
    "tpu.trace_start"() <{level = 10 : i32, message = "btd,bsd->bts"}> : () -> ()
    %cst_20 = arith.constant dense<0.000000e+00> : vector<2x8x8xf32>
    %32 = tpu.matmul %30, %31, %cst_20 {dimension_numbers = #tpu.dot_dimension_numbers<[2], [2], [1], [1], [0, 0, 0, 1, 1, 1], [0], [0]>} : vector<2x8x8xf32>, vector<2x8x8xf32>, vector<2x8x8xf32> -> vector<2x8x8xf32>
    "tpu.trace_stop"() : () -> ()
    %cst_21 = arith.constant dense<0xFF800000> : vector<2x8xf32>
    %33 = vector.multi_reduction <maximumf>, %32, %cst_21 [2] : vector<2x8x8xf32> to vector<2x8xf32>
    %34 = vector.shape_cast %33 : vector<2x8xf32> to vector<2x8x1xf32>
    %35 = vector.broadcast %34 : vector<2x8x1xf32> to vector<2x8x8xf32>
    %36 = arith.subf %32, %35 : vector<2x8x8xf32>
    %37 = math.exp %36 : vector<2x8x8xf32>
    %cst_22 = arith.constant dense<0.000000e+00> : vector<2x8xf32>
    %38 = vector.multi_reduction <add>, %37, %cst_22 [2] : vector<2x8x8xf32> to vector<2x8xf32>
    %39 = vector.shape_cast %38 : vector<2x8xf32> to vector<2x8x1xf32>
    %40 = tpu.reciprocal %39 {approx = true} : vector<2x8x1xf32> -> vector<2x8x1xf32>
    %41 = vector.broadcast %40 : vector<2x8x1xf32> to vector<2x8x8xf32>
    %42 = arith.mulf %37, %41 : vector<2x8x8xf32>
    %43 = vector.extract_strided_slice %29 {offsets = [0, 0, 0], sizes = [2, 8, 8], strides = [1, 1, 1]} : vector<2x8x32xf32> to vector<2x8x8xf32>
    "tpu.trace_start"() <{level = 10 : i32, message = "bts,bsd->btd"}> : () -> ()
    %cst_23 = arith.constant dense<0.000000e+00> : vector<2x8x8xf32>
    %44 = tpu.matmul %42, %43, %cst_23 {dimension_numbers = #tpu.dot_dimension_numbers<[2], [1], [1], [2], [0, 0, 0, 1, 1, 2], [0], [0]>} : vector<2x8x8xf32>, vector<2x8x8xf32>, vector<2x8x8xf32> -> vector<2x8x8xf32>
    "tpu.trace_stop"() : () -> ()
    %45 = vector.extract_strided_slice %25 {offsets = [0, 0, 8], sizes = [2, 8, 8], strides = [1, 1, 1]} : vector<2x8x32xf32> to vector<2x8x8xf32>
    %46 = vector.extract_strided_slice %27 {offsets = [0, 0, 8], sizes = [2, 8, 8], strides = [1, 1, 1]} : vector<2x8x32xf32> to vector<2x8x8xf32>
    "tpu.trace_start"() <{level = 10 : i32, message = "btd,bsd->bts"}> : () -> ()
    %cst_24 = arith.constant dense<0.000000e+00> : vector<2x8x8xf32>
    %47 = tpu.matmul %45, %46, %cst_24 {dimension_numbers = #tpu.dot_dimension_numbers<[2], [2], [1], [1], [0, 0, 0, 1, 1, 1], [0], [0]>} : vector<2x8x8xf32>, vector<2x8x8xf32>, vector<2x8x8xf32> -> vector<2x8x8xf32>
    "tpu.trace_stop"() : () -> ()
    %cst_25 = arith.constant dense<0xFF800000> : vector<2x8xf32>
    %48 = vector.multi_reduction <maximumf>, %47, %cst_25 [2] : vector<2x8x8xf32> to vector<2x8xf32>
    %49 = vector.shape_cast %48 : vector<2x8xf32> to vector<2x8x1xf32>
    %50 = vector.broadcast %49 : vector<2x8x1xf32> to vector<2x8x8xf32>
    %51 = arith.subf %47, %50 : vector<2x8x8xf32>
    %52 = math.exp %51 : vector<2x8x8xf32>
    %cst_26 = arith.constant dense<0.000000e+00> : vector<2x8xf32>
    %53 = vector.multi_reduction <add>, %52, %cst_26 [2] : vector<2x8x8xf32> to vector<2x8xf32>
    %54 = vector.shape_cast %53 : vector<2x8xf32> to vector<2x8x1xf32>
    %55 = tpu.reciprocal %54 {approx = true} : vector<2x8x1xf32> -> vector<2x8x1xf32>
    %56 = vector.broadcast %55 : vector<2x8x1xf32> to vector<2x8x8xf32>
    %57 = arith.mulf %52, %56 : vector<2x8x8xf32>
    %58 = vector.extract_strided_slice %29 {offsets = [0, 0, 8], sizes = [2, 8, 8], strides = [1, 1, 1]} : vector<2x8x32xf32> to vector<2x8x8xf32>
    "tpu.trace_start"() <{level = 10 : i32, message = "bts,bsd->btd"}> : () -> ()
    %cst_27 = arith.constant dense<0.000000e+00> : vector<2x8x8xf32>
    %59 = tpu.matmul %57, %58, %cst_27 {dimension_numbers = #tpu.dot_dimension_numbers<[2], [1], [1], [2], [0, 0, 0, 1, 1, 2], [0], [0]>} : vector<2x8x8xf32>, vector<2x8x8xf32>, vector<2x8x8xf32> -> vector<2x8x8xf32>
    "tpu.trace_stop"() : () -> ()
    %60 = vector.extract_strided_slice %25 {offsets = [0, 0, 16], sizes = [2, 8, 8], strides = [1, 1, 1]} : vector<2x8x32xf32> to vector<2x8x8xf32>
    %61 = vector.extract_strided_slice %27 {offsets = [0, 0, 16], sizes = [2, 8, 8], strides = [1, 1, 1]} : vector<2x8x32xf32> to vector<2x8x8xf32>
    "tpu.trace_start"() <{level = 10 : i32, message = "btd,bsd->bts"}> : () -> ()
    %cst_28 = arith.constant dense<0.000000e+00> : vector<2x8x8xf32>
    %62 = tpu.matmul %60, %61, %cst_28 {dimension_numbers = #tpu.dot_dimension_numbers<[2], [2], [1], [1], [0, 0, 0, 1, 1, 1], [0], [0]>} : vector<2x8x8xf32>, vector<2x8x8xf32>, vector<2x8x8xf32> -> vector<2x8x8xf32>
    "tpu.trace_stop"() : () -> ()
    %cst_29 = arith.constant dense<0xFF800000> : vector<2x8xf32>
    %63 = vector.multi_reduction <maximumf>, %62, %cst_29 [2] : vector<2x8x8xf32> to vector<2x8xf32>
    %64 = vector.shape_cast %63 : vector<2x8xf32> to vector<2x8x1xf32>
    %65 = vector.broadcast %64 : vector<2x8x1xf32> to vector<2x8x8xf32>
    %66 = arith.subf %62, %65 : vector<2x8x8xf32>
    %67 = math.exp %66 : vector<2x8x8xf32>
    %cst_30 = arith.constant dense<0.000000e+00> : vector<2x8xf32>
    %68 = vector.multi_reduction <add>, %67, %cst_30 [2] : vector<2x8x8xf32> to vector<2x8xf32>
    %69 = vector.shape_cast %68 : vector<2x8xf32> to vector<2x8x1xf32>
    %70 = tpu.reciprocal %69 {approx = true} : vector<2x8x1xf32> -> vector<2x8x1xf32>
    %71 = vector.broadcast %70 : vector<2x8x1xf32> to vector<2x8x8xf32>
    %72 = arith.mulf %67, %71 : vector<2x8x8xf32>
    %73 = vector.extract_strided_slice %29 {offsets = [0, 0, 16], sizes = [2, 8, 8], strides = [1, 1, 1]} : vector<2x8x32xf32> to vector<2x8x8xf32>
    "tpu.trace_start"() <{level = 10 : i32, message = "bts,bsd->btd"}> : () -> ()
    %cst_31 = arith.constant dense<0.000000e+00> : vector<2x8x8xf32>
    %74 = tpu.matmul %72, %73, %cst_31 {dimension_numbers = #tpu.dot_dimension_numbers<[2], [1], [1], [2], [0, 0, 0, 1, 1, 2], [0], [0]>} : vector<2x8x8xf32>, vector<2x8x8xf32>, vector<2x8x8xf32> -> vector<2x8x8xf32>
    "tpu.trace_stop"() : () -> ()
    %75 = vector.extract_strided_slice %25 {offsets = [0, 0, 24], sizes = [2, 8, 8], strides = [1, 1, 1]} : vector<2x8x32xf32> to vector<2x8x8xf32>
    %76 = vector.extract_strided_slice %27 {offsets = [0, 0, 24], sizes = [2, 8, 8], strides = [1, 1, 1]} : vector<2x8x32xf32> to vector<2x8x8xf32>
    "tpu.trace_start"() <{level = 10 : i32, message = "btd,bsd->bts"}> : () -> ()
    %cst_32 = arith.constant dense<0.000000e+00> : vector<2x8x8xf32>
    %77 = tpu.matmul %75, %76, %cst_32 {dimension_numbers = #tpu.dot_dimension_numbers<[2], [2], [1], [1], [0, 0, 0, 1, 1, 1], [0], [0]>} : vector<2x8x8xf32>, vector<2x8x8xf32>, vector<2x8x8xf32> -> vector<2x8x8xf32>
    "tpu.trace_stop"() : () -> ()
    %cst_33 = arith.constant dense<0xFF800000> : vector<2x8xf32>
    %78 = vector.multi_reduction <maximumf>, %77, %cst_33 [2] : vector<2x8x8xf32> to vector<2x8xf32>
    %79 = vector.shape_cast %78 : vector<2x8xf32> to vector<2x8x1xf32>
    %80 = vector.broadcast %79 : vector<2x8x1xf32> to vector<2x8x8xf32>
    %81 = arith.subf %77, %80 : vector<2x8x8xf32>
    %82 = math.exp %81 : vector<2x8x8xf32>
    %cst_34 = arith.constant dense<0.000000e+00> : vector<2x8xf32>
    %83 = vector.multi_reduction <add>, %82, %cst_34 [2] : vector<2x8x8xf32> to vector<2x8xf32>
    %84 = vector.shape_cast %83 : vector<2x8xf32> to vector<2x8x1xf32>
    %85 = tpu.reciprocal %84 {approx = true} : vector<2x8x1xf32> -> vector<2x8x1xf32>
    %86 = vector.broadcast %85 : vector<2x8x1xf32> to vector<2x8x8xf32>
    %87 = arith.mulf %82, %86 : vector<2x8x8xf32>
    %88 = vector.extract_strided_slice %29 {offsets = [0, 0, 24], sizes = [2, 8, 8], strides = [1, 1, 1]} : vector<2x8x32xf32> to vector<2x8x8xf32>
    "tpu.trace_start"() <{level = 10 : i32, message = "bts,bsd->btd"}> : () -> ()
    %cst_35 = arith.constant dense<0.000000e+00> : vector<2x8x8xf32>
    %89 = tpu.matmul %87, %88, %cst_35 {dimension_numbers = #tpu.dot_dimension_numbers<[2], [1], [1], [2], [0, 0, 0, 1, 1, 2], [0], [0]>} : vector<2x8x8xf32>, vector<2x8x8xf32>, vector<2x8x8xf32> -> vector<2x8x8xf32>
    "tpu.trace_stop"() : () -> ()
    %90 = tpu.concatenate %44, %59, %74, %89 in 2 : vector<2x8x8xf32>, vector<2x8x8xf32>, vector<2x8x8xf32>, vector<2x8x8xf32> -> vector<2x8x32xf32>
    %91 = vector.shape_cast %90 : vector<2x8x32xf32> to vector<16x32xf32>
    %92 = vector.extract_strided_slice %17 {offsets = [0, 0], sizes = [32, 32], strides = [1, 1]} : vector<32x256xf32> to vector<32x32xf32>
    %cst_36 = arith.constant dense<0.000000e+00> : vector<16x32xf32>
    %93 = tpu.matmul %91, %92, %cst_36 {dimension_numbers = #tpu.dot_dimension_numbers<[1], [0], [0], [1], [0, 0, 1, 1], [], []>} : vector<16x32xf32>, vector<32x32xf32>, vector<16x32xf32> -> vector<16x32xf32>
    %c1 = arith.constant 1 : index
    %c0_37 = arith.constant 0 : index
    %94 = vector.load %arg7[%c1, %c0_37] : memref<24x384xf32, #tpu.memory_space<vmem>>, vector<1x32xf32>
    %95 = vector.broadcast %94 : vector<1x32xf32> to vector<16x32xf32>
    %96 = arith.addf %93, %95 : vector<16x32xf32>
    %97 = arith.addf %15, %96 : vector<16x32xf32>
    %c2 = arith.constant 2 : index
    %c0_38 = arith.constant 0 : index
    %98 = vector.load %arg7[%c2, %c0_38] : memref<24x384xf32, #tpu.memory_space<vmem>>, vector<1x32xf32>
    %c3 = arith.constant 3 : index
    %c0_39 = arith.constant 0 : index
    %99 = vector.load %arg7[%c3, %c0_39] : memref<24x384xf32, #tpu.memory_space<vmem>>, vector<1x32xf32>
    %cst_40 = arith.constant dense<0.000000e+00> : vector<16xf32>
    %100 = vector.multi_reduction <add>, %97, %cst_40 [1] : vector<16x32xf32> to vector<16xf32>
    %101 = vector.shape_cast %100 : vector<16xf32> to vector<16x1xf32>
    %cst_41 = arith.constant 3.200000e+01 : f32
    %102 = vector.broadcast %cst_41 : f32 to vector<16x1xf32>
    %103 = arith.divf %101, %102 : vector<16x1xf32>
    %104 = arith.mulf %97, %97 : vector<16x32xf32>
    %cst_42 = arith.constant dense<0.000000e+00> : vector<16xf32>
    %105 = vector.multi_reduction <add>, %104, %cst_42 [1] : vector<16x32xf32> to vector<16xf32>
    %106 = vector.shape_cast %105 : vector<16xf32> to vector<16x1xf32>
    %cst_43 = arith.constant 3.200000e+01 : f32
    %107 = vector.broadcast %cst_43 : f32 to vector<16x1xf32>
    %108 = arith.divf %106, %107 : vector<16x1xf32>
    %109 = arith.mulf %103, %103 : vector<16x1xf32>
    %110 = arith.subf %108, %109 : vector<16x1xf32>
    %cst_44 = arith.constant 9.99999974E-6 : f32
    %111 = vector.broadcast %cst_44 : f32 to vector<16x1xf32>
    %112 = arith.addf %110, %111 : vector<16x1xf32>
    %113 = math.rsqrt %112 : vector<16x1xf32>
    %114 = vector.broadcast %98 : vector<1x32xf32> to vector<16x32xf32>
    %115 = vector.broadcast %113 : vector<16x1xf32> to vector<16x32xf32>
    %116 = arith.mulf %114, %115 : vector<16x32xf32>
    %117 = arith.mulf %97, %116 : vector<16x32xf32>
    %118 = vector.broadcast %103 : vector<16x1xf32> to vector<16x32xf32>
    %119 = arith.mulf %118, %116 : vector<16x32xf32>
    %120 = vector.broadcast %99 : vector<1x32xf32> to vector<16x32xf32>
    %121 = arith.subf %120, %119 : vector<16x32xf32>
    %122 = arith.addf %117, %121 : vector<16x32xf32>
    %123 = vector.extract_strided_slice %17 {offsets = [0, 128], sizes = [32, 64], strides = [1, 1]} : vector<32x256xf32> to vector<32x64xf32>
    %cst_45 = arith.constant dense<0.000000e+00> : vector<16x64xf32>
    %124 = tpu.matmul %122, %123, %cst_45 {dimension_numbers = #tpu.dot_dimension_numbers<[1], [0], [0], [1], [0, 0, 1, 1], [], []>} : vector<16x32xf32>, vector<32x64xf32>, vector<16x64xf32> -> vector<16x64xf32>
    %c4 = arith.constant 4 : index
    %c0_46 = arith.constant 0 : index
    %125 = vector.load %arg7[%c4, %c0_46] : memref<24x384xf32, #tpu.memory_space<vmem>>, vector<1x64xf32>
    %126 = vector.broadcast %125 : vector<1x64xf32> to vector<16x64xf32>
    %127 = arith.addf %124, %126 : vector<16x64xf32>
    %cst_47 = arith.constant 0.000000e+00 : f32
    %128 = vector.broadcast %cst_47 : f32 to vector<16x64xf32>
    %129 = arith.maximumf %127, %128 : vector<16x64xf32>
    %c0_48 = arith.constant 0 : index
    %c0_49 = arith.constant 0 : index
    %c0_50 = arith.constant 0 : index
    %130 = vector.load %arg6[%c0_48, %c0_49, %c0_50] : memref<3x64x32xf32, #tpu.memory_space<vmem>>, vector<1x64x32xf32>
    %131 = vector.shape_cast %130 : vector<1x64x32xf32> to vector<64x32xf32>
    %cst_51 = arith.constant dense<0.000000e+00> : vector<16x32xf32>
    %132 = tpu.matmul %129, %131, %cst_51 {dimension_numbers = #tpu.dot_dimension_numbers<[1], [0], [0], [1], [0, 0, 1, 1], [], []>} : vector<16x64xf32>, vector<64x32xf32>, vector<16x32xf32> -> vector<16x32xf32>
    %c5 = arith.constant 5 : index
    %c0_52 = arith.constant 0 : index
    %133 = vector.load %arg7[%c5, %c0_52] : memref<24x384xf32, #tpu.memory_space<vmem>>, vector<1x32xf32>
    %134 = vector.broadcast %133 : vector<1x32xf32> to vector<16x32xf32>
    %135 = arith.addf %132, %134 : vector<16x32xf32>
    %136 = arith.addf %122, %135 : vector<16x32xf32>
    %c6 = arith.constant 6 : index
    %c0_53 = arith.constant 0 : index
    %137 = vector.load %arg7[%c6, %c0_53] : memref<24x384xf32, #tpu.memory_space<vmem>>, vector<1x32xf32>
    %c7 = arith.constant 7 : index
    %c0_54 = arith.constant 0 : index
    %138 = vector.load %arg7[%c7, %c0_54] : memref<24x384xf32, #tpu.memory_space<vmem>>, vector<1x32xf32>
    %cst_55 = arith.constant dense<0.000000e+00> : vector<16xf32>
    %139 = vector.multi_reduction <add>, %136, %cst_55 [1] : vector<16x32xf32> to vector<16xf32>
    %140 = vector.shape_cast %139 : vector<16xf32> to vector<16x1xf32>
    %cst_56 = arith.constant 3.200000e+01 : f32
    %141 = vector.broadcast %cst_56 : f32 to vector<16x1xf32>
    %142 = arith.divf %140, %141 : vector<16x1xf32>
    %143 = arith.mulf %136, %136 : vector<16x32xf32>
    %cst_57 = arith.constant dense<0.000000e+00> : vector<16xf32>
    %144 = vector.multi_reduction <add>, %143, %cst_57 [1] : vector<16x32xf32> to vector<16xf32>
    %145 = vector.shape_cast %144 : vector<16xf32> to vector<16x1xf32>
    %cst_58 = arith.constant 3.200000e+01 : f32
    %146 = vector.broadcast %cst_58 : f32 to vector<16x1xf32>
    %147 = arith.divf %145, %146 : vector<16x1xf32>
    %148 = arith.mulf %142, %142 : vector<16x1xf32>
    %149 = arith.subf %147, %148 : vector<16x1xf32>
    %cst_59 = arith.constant 9.99999974E-6 : f32
    %150 = vector.broadcast %cst_59 : f32 to vector<16x1xf32>
    %151 = arith.addf %149, %150 : vector<16x1xf32>
    %152 = math.rsqrt %151 : vector<16x1xf32>
    %153 = vector.broadcast %137 : vector<1x32xf32> to vector<16x32xf32>
    %154 = vector.broadcast %152 : vector<16x1xf32> to vector<16x32xf32>
    %155 = arith.mulf %153, %154 : vector<16x32xf32>
    %156 = arith.mulf %136, %155 : vector<16x32xf32>
    %157 = vector.broadcast %142 : vector<16x1xf32> to vector<16x32xf32>
    %158 = arith.mulf %157, %155 : vector<16x32xf32>
    %159 = vector.broadcast %138 : vector<1x32xf32> to vector<16x32xf32>
    %160 = arith.subf %159, %158 : vector<16x32xf32>
    %161 = arith.addf %156, %160 : vector<16x32xf32>
    %c1_60 = arith.constant 1 : index
    %c0_61 = arith.constant 0 : index
    %c0_62 = arith.constant 0 : index
    %162 = vector.load %arg5[%c1_60, %c0_61, %c0_62] : memref<2x32x256xf32, #tpu.memory_space<vmem>>, vector<1x32x256xf32>
    %163 = vector.shape_cast %162 : vector<1x32x256xf32> to vector<32x256xf32>
    %c1_63 = arith.constant 1 : index
    %c0_64 = arith.constant 0 : index
    %c0_65 = arith.constant 0 : index
    %164 = vector.load %arg4[%c1_63, %c0_64, %c0_65] : memref<2x32x384xf32, #tpu.memory_space<vmem>>, vector<1x32x384xf32>
    %165 = vector.shape_cast %164 : vector<1x32x384xf32> to vector<32x384xf32>
    %cst_66 = arith.constant dense<0.000000e+00> : vector<16x384xf32>
    %166 = tpu.matmul %161, %165, %cst_66 {dimension_numbers = #tpu.dot_dimension_numbers<[1], [0], [0], [1], [0, 0, 1, 1], [], []>} : vector<16x32xf32>, vector<32x384xf32>, vector<16x384xf32> -> vector<16x384xf32>
    %c8 = arith.constant 8 : index
    %c0_67 = arith.constant 0 : index
    %167 = vector.load %arg7[%c8, %c0_67] : memref<24x384xf32, #tpu.memory_space<vmem>>, vector<1x384xf32>
    %168 = vector.broadcast %167 : vector<1x384xf32> to vector<16x384xf32>
    %169 = arith.addf %166, %168 : vector<16x384xf32>
    %170 = vector.extract_strided_slice %169 {offsets = [0, 0], sizes = [16, 32], strides = [1, 1]} : vector<16x384xf32> to vector<16x32xf32>
    %171 = vector.shape_cast %170 : vector<16x32xf32> to vector<2x8x32xf32>
    %172 = vector.extract_strided_slice %169 {offsets = [0, 128], sizes = [16, 32], strides = [1, 1]} : vector<16x384xf32> to vector<16x32xf32>
    %173 = vector.shape_cast %172 : vector<16x32xf32> to vector<2x8x32xf32>
    %174 = vector.extract_strided_slice %169 {offsets = [0, 256], sizes = [16, 32], strides = [1, 1]} : vector<16x384xf32> to vector<16x32xf32>
    %175 = vector.shape_cast %174 : vector<16x32xf32> to vector<2x8x32xf32>
    %176 = vector.extract_strided_slice %171 {offsets = [0, 0, 0], sizes = [2, 8, 8], strides = [1, 1, 1]} : vector<2x8x32xf32> to vector<2x8x8xf32>
    %177 = vector.extract_strided_slice %173 {offsets = [0, 0, 0], sizes = [2, 8, 8], strides = [1, 1, 1]} : vector<2x8x32xf32> to vector<2x8x8xf32>
    "tpu.trace_start"() <{level = 10 : i32, message = "btd,bsd->bts"}> : () -> ()
    %cst_68 = arith.constant dense<0.000000e+00> : vector<2x8x8xf32>
    %178 = tpu.matmul %176, %177, %cst_68 {dimension_numbers = #tpu.dot_dimension_numbers<[2], [2], [1], [1], [0, 0, 0, 1, 1, 1], [0], [0]>} : vector<2x8x8xf32>, vector<2x8x8xf32>, vector<2x8x8xf32> -> vector<2x8x8xf32>
    "tpu.trace_stop"() : () -> ()
    %cst_69 = arith.constant dense<0xFF800000> : vector<2x8xf32>
    %179 = vector.multi_reduction <maximumf>, %178, %cst_69 [2] : vector<2x8x8xf32> to vector<2x8xf32>
    %180 = vector.shape_cast %179 : vector<2x8xf32> to vector<2x8x1xf32>
    %181 = vector.broadcast %180 : vector<2x8x1xf32> to vector<2x8x8xf32>
    %182 = arith.subf %178, %181 : vector<2x8x8xf32>
    %183 = math.exp %182 : vector<2x8x8xf32>
    %cst_70 = arith.constant dense<0.000000e+00> : vector<2x8xf32>
    %184 = vector.multi_reduction <add>, %183, %cst_70 [2] : vector<2x8x8xf32> to vector<2x8xf32>
    %185 = vector.shape_cast %184 : vector<2x8xf32> to vector<2x8x1xf32>
    %186 = tpu.reciprocal %185 {approx = true} : vector<2x8x1xf32> -> vector<2x8x1xf32>
    %187 = vector.broadcast %186 : vector<2x8x1xf32> to vector<2x8x8xf32>
    %188 = arith.mulf %183, %187 : vector<2x8x8xf32>
    %189 = vector.extract_strided_slice %175 {offsets = [0, 0, 0], sizes = [2, 8, 8], strides = [1, 1, 1]} : vector<2x8x32xf32> to vector<2x8x8xf32>
    "tpu.trace_start"() <{level = 10 : i32, message = "bts,bsd->btd"}> : () -> ()
    %cst_71 = arith.constant dense<0.000000e+00> : vector<2x8x8xf32>
    %190 = tpu.matmul %188, %189, %cst_71 {dimension_numbers = #tpu.dot_dimension_numbers<[2], [1], [1], [2], [0, 0, 0, 1, 1, 2], [0], [0]>} : vector<2x8x8xf32>, vector<2x8x8xf32>, vector<2x8x8xf32> -> vector<2x8x8xf32>
    "tpu.trace_stop"() : () -> ()
    %191 = vector.extract_strided_slice %171 {offsets = [0, 0, 8], sizes = [2, 8, 8], strides = [1, 1, 1]} : vector<2x8x32xf32> to vector<2x8x8xf32>
    %192 = vector.extract_strided_slice %173 {offsets = [0, 0, 8], sizes = [2, 8, 8], strides = [1, 1, 1]} : vector<2x8x32xf32> to vector<2x8x8xf32>
    "tpu.trace_start"() <{level = 10 : i32, message = "btd,bsd->bts"}> : () -> ()
    %cst_72 = arith.constant dense<0.000000e+00> : vector<2x8x8xf32>
    %193 = tpu.matmul %191, %192, %cst_72 {dimension_numbers = #tpu.dot_dimension_numbers<[2], [2], [1], [1], [0, 0, 0, 1, 1, 1], [0], [0]>} : vector<2x8x8xf32>, vector<2x8x8xf32>, vector<2x8x8xf32> -> vector<2x8x8xf32>
    "tpu.trace_stop"() : () -> ()
    %cst_73 = arith.constant dense<0xFF800000> : vector<2x8xf32>
    %194 = vector.multi_reduction <maximumf>, %193, %cst_73 [2] : vector<2x8x8xf32> to vector<2x8xf32>
    %195 = vector.shape_cast %194 : vector<2x8xf32> to vector<2x8x1xf32>
    %196 = vector.broadcast %195 : vector<2x8x1xf32> to vector<2x8x8xf32>
    %197 = arith.subf %193, %196 : vector<2x8x8xf32>
    %198 = math.exp %197 : vector<2x8x8xf32>
    %cst_74 = arith.constant dense<0.000000e+00> : vector<2x8xf32>
    %199 = vector.multi_reduction <add>, %198, %cst_74 [2] : vector<2x8x8xf32> to vector<2x8xf32>
    %200 = vector.shape_cast %199 : vector<2x8xf32> to vector<2x8x1xf32>
    %201 = tpu.reciprocal %200 {approx = true} : vector<2x8x1xf32> -> vector<2x8x1xf32>
    %202 = vector.broadcast %201 : vector<2x8x1xf32> to vector<2x8x8xf32>
    %203 = arith.mulf %198, %202 : vector<2x8x8xf32>
    %204 = vector.extract_strided_slice %175 {offsets = [0, 0, 8], sizes = [2, 8, 8], strides = [1, 1, 1]} : vector<2x8x32xf32> to vector<2x8x8xf32>
    "tpu.trace_start"() <{level = 10 : i32, message = "bts,bsd->btd"}> : () -> ()
    %cst_75 = arith.constant dense<0.000000e+00> : vector<2x8x8xf32>
    %205 = tpu.matmul %203, %204, %cst_75 {dimension_numbers = #tpu.dot_dimension_numbers<[2], [1], [1], [2], [0, 0, 0, 1, 1, 2], [0], [0]>} : vector<2x8x8xf32>, vector<2x8x8xf32>, vector<2x8x8xf32> -> vector<2x8x8xf32>
    "tpu.trace_stop"() : () -> ()
    %206 = vector.extract_strided_slice %171 {offsets = [0, 0, 16], sizes = [2, 8, 8], strides = [1, 1, 1]} : vector<2x8x32xf32> to vector<2x8x8xf32>
    %207 = vector.extract_strided_slice %173 {offsets = [0, 0, 16], sizes = [2, 8, 8], strides = [1, 1, 1]} : vector<2x8x32xf32> to vector<2x8x8xf32>
    "tpu.trace_start"() <{level = 10 : i32, message = "btd,bsd->bts"}> : () -> ()
    %cst_76 = arith.constant dense<0.000000e+00> : vector<2x8x8xf32>
    %208 = tpu.matmul %206, %207, %cst_76 {dimension_numbers = #tpu.dot_dimension_numbers<[2], [2], [1], [1], [0, 0, 0, 1, 1, 1], [0], [0]>} : vector<2x8x8xf32>, vector<2x8x8xf32>, vector<2x8x8xf32> -> vector<2x8x8xf32>
    "tpu.trace_stop"() : () -> ()
    %cst_77 = arith.constant dense<0xFF800000> : vector<2x8xf32>
    %209 = vector.multi_reduction <maximumf>, %208, %cst_77 [2] : vector<2x8x8xf32> to vector<2x8xf32>
    %210 = vector.shape_cast %209 : vector<2x8xf32> to vector<2x8x1xf32>
    %211 = vector.broadcast %210 : vector<2x8x1xf32> to vector<2x8x8xf32>
    %212 = arith.subf %208, %211 : vector<2x8x8xf32>
    %213 = math.exp %212 : vector<2x8x8xf32>
    %cst_78 = arith.constant dense<0.000000e+00> : vector<2x8xf32>
    %214 = vector.multi_reduction <add>, %213, %cst_78 [2] : vector<2x8x8xf32> to vector<2x8xf32>
    %215 = vector.shape_cast %214 : vector<2x8xf32> to vector<2x8x1xf32>
    %216 = tpu.reciprocal %215 {approx = true} : vector<2x8x1xf32> -> vector<2x8x1xf32>
    %217 = vector.broadcast %216 : vector<2x8x1xf32> to vector<2x8x8xf32>
    %218 = arith.mulf %213, %217 : vector<2x8x8xf32>
    %219 = vector.extract_strided_slice %175 {offsets = [0, 0, 16], sizes = [2, 8, 8], strides = [1, 1, 1]} : vector<2x8x32xf32> to vector<2x8x8xf32>
    "tpu.trace_start"() <{level = 10 : i32, message = "bts,bsd->btd"}> : () -> ()
    %cst_79 = arith.constant dense<0.000000e+00> : vector<2x8x8xf32>
    %220 = tpu.matmul %218, %219, %cst_79 {dimension_numbers = #tpu.dot_dimension_numbers<[2], [1], [1], [2], [0, 0, 0, 1, 1, 2], [0], [0]>} : vector<2x8x8xf32>, vector<2x8x8xf32>, vector<2x8x8xf32> -> vector<2x8x8xf32>
    "tpu.trace_stop"() : () -> ()
    %221 = vector.extract_strided_slice %171 {offsets = [0, 0, 24], sizes = [2, 8, 8], strides = [1, 1, 1]} : vector<2x8x32xf32> to vector<2x8x8xf32>
    %222 = vector.extract_strided_slice %173 {offsets = [0, 0, 24], sizes = [2, 8, 8], strides = [1, 1, 1]} : vector<2x8x32xf32> to vector<2x8x8xf32>
    "tpu.trace_start"() <{level = 10 : i32, message = "btd,bsd->bts"}> : () -> ()
    %cst_80 = arith.constant dense<0.000000e+00> : vector<2x8x8xf32>
    %223 = tpu.matmul %221, %222, %cst_80 {dimension_numbers = #tpu.dot_dimension_numbers<[2], [2], [1], [1], [0, 0, 0, 1, 1, 1], [0], [0]>} : vector<2x8x8xf32>, vector<2x8x8xf32>, vector<2x8x8xf32> -> vector<2x8x8xf32>
    "tpu.trace_stop"() : () -> ()
    %cst_81 = arith.constant dense<0xFF800000> : vector<2x8xf32>
    %224 = vector.multi_reduction <maximumf>, %223, %cst_81 [2] : vector<2x8x8xf32> to vector<2x8xf32>
    %225 = vector.shape_cast %224 : vector<2x8xf32> to vector<2x8x1xf32>
    %226 = vector.broadcast %225 : vector<2x8x1xf32> to vector<2x8x8xf32>
    %227 = arith.subf %223, %226 : vector<2x8x8xf32>
    %228 = math.exp %227 : vector<2x8x8xf32>
    %cst_82 = arith.constant dense<0.000000e+00> : vector<2x8xf32>
    %229 = vector.multi_reduction <add>, %228, %cst_82 [2] : vector<2x8x8xf32> to vector<2x8xf32>
    %230 = vector.shape_cast %229 : vector<2x8xf32> to vector<2x8x1xf32>
    %231 = tpu.reciprocal %230 {approx = true} : vector<2x8x1xf32> -> vector<2x8x1xf32>
    %232 = vector.broadcast %231 : vector<2x8x1xf32> to vector<2x8x8xf32>
    %233 = arith.mulf %228, %232 : vector<2x8x8xf32>
    %234 = vector.extract_strided_slice %175 {offsets = [0, 0, 24], sizes = [2, 8, 8], strides = [1, 1, 1]} : vector<2x8x32xf32> to vector<2x8x8xf32>
    "tpu.trace_start"() <{level = 10 : i32, message = "bts,bsd->btd"}> : () -> ()
    %cst_83 = arith.constant dense<0.000000e+00> : vector<2x8x8xf32>
    %235 = tpu.matmul %233, %234, %cst_83 {dimension_numbers = #tpu.dot_dimension_numbers<[2], [1], [1], [2], [0, 0, 0, 1, 1, 2], [0], [0]>} : vector<2x8x8xf32>, vector<2x8x8xf32>, vector<2x8x8xf32> -> vector<2x8x8xf32>
    "tpu.trace_stop"() : () -> ()
    %236 = tpu.concatenate %190, %205, %220, %235 in 2 : vector<2x8x8xf32>, vector<2x8x8xf32>, vector<2x8x8xf32>, vector<2x8x8xf32> -> vector<2x8x32xf32>
    %237 = vector.shape_cast %236 : vector<2x8x32xf32> to vector<16x32xf32>
    %238 = vector.extract_strided_slice %163 {offsets = [0, 0], sizes = [32, 32], strides = [1, 1]} : vector<32x256xf32> to vector<32x32xf32>
    %cst_84 = arith.constant dense<0.000000e+00> : vector<16x32xf32>
    %239 = tpu.matmul %237, %238, %cst_84 {dimension_numbers = #tpu.dot_dimension_numbers<[1], [0], [0], [1], [0, 0, 1, 1], [], []>} : vector<16x32xf32>, vector<32x32xf32>, vector<16x32xf32> -> vector<16x32xf32>
    %c9 = arith.constant 9 : index
    %c0_85 = arith.constant 0 : index
    %240 = vector.load %arg7[%c9, %c0_85] : memref<24x384xf32, #tpu.memory_space<vmem>>, vector<1x32xf32>
    %241 = vector.broadcast %240 : vector<1x32xf32> to vector<16x32xf32>
    %242 = arith.addf %239, %241 : vector<16x32xf32>
    %243 = arith.addf %161, %242 : vector<16x32xf32>
    %c10 = arith.constant 10 : index
    %c0_86 = arith.constant 0 : index
    %244 = vector.load %arg7[%c10, %c0_86] : memref<24x384xf32, #tpu.memory_space<vmem>>, vector<1x32xf32>
    %c11 = arith.constant 11 : index
    %c0_87 = arith.constant 0 : index
    %245 = vector.load %arg7[%c11, %c0_87] : memref<24x384xf32, #tpu.memory_space<vmem>>, vector<1x32xf32>
    %cst_88 = arith.constant dense<0.000000e+00> : vector<16xf32>
    %246 = vector.multi_reduction <add>, %243, %cst_88 [1] : vector<16x32xf32> to vector<16xf32>
    %247 = vector.shape_cast %246 : vector<16xf32> to vector<16x1xf32>
    %cst_89 = arith.constant 3.200000e+01 : f32
    %248 = vector.broadcast %cst_89 : f32 to vector<16x1xf32>
    %249 = arith.divf %247, %248 : vector<16x1xf32>
    %250 = arith.mulf %243, %243 : vector<16x32xf32>
    %cst_90 = arith.constant dense<0.000000e+00> : vector<16xf32>
    %251 = vector.multi_reduction <add>, %250, %cst_90 [1] : vector<16x32xf32> to vector<16xf32>
    %252 = vector.shape_cast %251 : vector<16xf32> to vector<16x1xf32>
    %cst_91 = arith.constant 3.200000e+01 : f32
    %253 = vector.broadcast %cst_91 : f32 to vector<16x1xf32>
    %254 = arith.divf %252, %253 : vector<16x1xf32>
    %255 = arith.mulf %249, %249 : vector<16x1xf32>
    %256 = arith.subf %254, %255 : vector<16x1xf32>
    %cst_92 = arith.constant 9.99999974E-6 : f32
    %257 = vector.broadcast %cst_92 : f32 to vector<16x1xf32>
    %258 = arith.addf %256, %257 : vector<16x1xf32>
    %259 = math.rsqrt %258 : vector<16x1xf32>
    %260 = vector.broadcast %244 : vector<1x32xf32> to vector<16x32xf32>
    %261 = vector.broadcast %259 : vector<16x1xf32> to vector<16x32xf32>
    %262 = arith.mulf %260, %261 : vector<16x32xf32>
    %263 = arith.mulf %243, %262 : vector<16x32xf32>
    %264 = vector.broadcast %249 : vector<16x1xf32> to vector<16x32xf32>
    %265 = arith.mulf %264, %262 : vector<16x32xf32>
    %266 = vector.broadcast %245 : vector<1x32xf32> to vector<16x32xf32>
    %267 = arith.subf %266, %265 : vector<16x32xf32>
    %268 = arith.addf %263, %267 : vector<16x32xf32>
    %269 = vector.extract_strided_slice %163 {offsets = [0, 128], sizes = [32, 64], strides = [1, 1]} : vector<32x256xf32> to vector<32x64xf32>
    %cst_93 = arith.constant dense<0.000000e+00> : vector<16x64xf32>
    %270 = tpu.matmul %268, %269, %cst_93 {dimension_numbers = #tpu.dot_dimension_numbers<[1], [0], [0], [1], [0, 0, 1, 1], [], []>} : vector<16x32xf32>, vector<32x64xf32>, vector<16x64xf32> -> vector<16x64xf32>
    %c12 = arith.constant 12 : index
    %c0_94 = arith.constant 0 : index
    %271 = vector.load %arg7[%c12, %c0_94] : memref<24x384xf32, #tpu.memory_space<vmem>>, vector<1x64xf32>
    %272 = vector.broadcast %271 : vector<1x64xf32> to vector<16x64xf32>
    %273 = arith.addf %270, %272 : vector<16x64xf32>
    %cst_95 = arith.constant 0.000000e+00 : f32
    %274 = vector.broadcast %cst_95 : f32 to vector<16x64xf32>
    %275 = arith.maximumf %273, %274 : vector<16x64xf32>
    %c1_96 = arith.constant 1 : index
    %c0_97 = arith.constant 0 : index
    %c0_98 = arith.constant 0 : index
    %276 = vector.load %arg6[%c1_96, %c0_97, %c0_98] : memref<3x64x32xf32, #tpu.memory_space<vmem>>, vector<1x64x32xf32>
    %277 = vector.shape_cast %276 : vector<1x64x32xf32> to vector<64x32xf32>
    %cst_99 = arith.constant dense<0.000000e+00> : vector<16x32xf32>
    %278 = tpu.matmul %275, %277, %cst_99 {dimension_numbers = #tpu.dot_dimension_numbers<[1], [0], [0], [1], [0, 0, 1, 1], [], []>} : vector<16x64xf32>, vector<64x32xf32>, vector<16x32xf32> -> vector<16x32xf32>
    %c13 = arith.constant 13 : index
    %c0_100 = arith.constant 0 : index
    %279 = vector.load %arg7[%c13, %c0_100] : memref<24x384xf32, #tpu.memory_space<vmem>>, vector<1x32xf32>
    %280 = vector.broadcast %279 : vector<1x32xf32> to vector<16x32xf32>
    %281 = arith.addf %278, %280 : vector<16x32xf32>
    %282 = arith.addf %268, %281 : vector<16x32xf32>
    %c14 = arith.constant 14 : index
    %c0_101 = arith.constant 0 : index
    %283 = vector.load %arg7[%c14, %c0_101] : memref<24x384xf32, #tpu.memory_space<vmem>>, vector<1x32xf32>
    %c15 = arith.constant 15 : index
    %c0_102 = arith.constant 0 : index
    %284 = vector.load %arg7[%c15, %c0_102] : memref<24x384xf32, #tpu.memory_space<vmem>>, vector<1x32xf32>
    %cst_103 = arith.constant dense<0.000000e+00> : vector<16xf32>
    %285 = vector.multi_reduction <add>, %282, %cst_103 [1] : vector<16x32xf32> to vector<16xf32>
    %286 = vector.shape_cast %285 : vector<16xf32> to vector<16x1xf32>
    %cst_104 = arith.constant 3.200000e+01 : f32
    %287 = vector.broadcast %cst_104 : f32 to vector<16x1xf32>
    %288 = arith.divf %286, %287 : vector<16x1xf32>
    %289 = arith.mulf %282, %282 : vector<16x32xf32>
    %cst_105 = arith.constant dense<0.000000e+00> : vector<16xf32>
    %290 = vector.multi_reduction <add>, %289, %cst_105 [1] : vector<16x32xf32> to vector<16xf32>
    %291 = vector.shape_cast %290 : vector<16xf32> to vector<16x1xf32>
    %cst_106 = arith.constant 3.200000e+01 : f32
    %292 = vector.broadcast %cst_106 : f32 to vector<16x1xf32>
    %293 = arith.divf %291, %292 : vector<16x1xf32>
    %294 = arith.mulf %288, %288 : vector<16x1xf32>
    %295 = arith.subf %293, %294 : vector<16x1xf32>
    %cst_107 = arith.constant 9.99999974E-6 : f32
    %296 = vector.broadcast %cst_107 : f32 to vector<16x1xf32>
    %297 = arith.addf %295, %296 : vector<16x1xf32>
    %298 = math.rsqrt %297 : vector<16x1xf32>
    %299 = vector.broadcast %283 : vector<1x32xf32> to vector<16x32xf32>
    %300 = vector.broadcast %298 : vector<16x1xf32> to vector<16x32xf32>
    %301 = arith.mulf %299, %300 : vector<16x32xf32>
    %302 = arith.mulf %282, %301 : vector<16x32xf32>
    %303 = vector.broadcast %288 : vector<16x1xf32> to vector<16x32xf32>
    %304 = arith.mulf %303, %301 : vector<16x32xf32>
    %305 = vector.broadcast %284 : vector<1x32xf32> to vector<16x32xf32>
    %306 = arith.subf %305, %304 : vector<16x32xf32>
    %307 = arith.addf %302, %306 : vector<16x32xf32>
    %308 = vector.shape_cast %307 : vector<16x32xf32> to vector<2x8x32xf32>
    %309 = vector.extract_strided_slice %308 {offsets = [0, 7, 0], sizes = [2, 1, 32], strides = [1, 1, 1]} : vector<2x8x32xf32> to vector<2x1x32xf32>
    %310 = vector.shape_cast %309 : vector<2x1x32xf32> to vector<2x32xf32>
    %c2_108 = arith.constant 2 : index
    %c0_109 = arith.constant 0 : index
    %c0_110 = arith.constant 0 : index
    %311 = vector.load %arg6[%c2_108, %c0_109, %c0_110] : memref<3x64x32xf32, #tpu.memory_space<vmem>>, vector<1x64x32xf32>
    %312 = vector.shape_cast %311 : vector<1x64x32xf32> to vector<64x32xf32>
    %313 = vector.extract_strided_slice %312 {offsets = [0, 0], sizes = [32, 2], strides = [1, 1]} : vector<64x32xf32> to vector<32x2xf32>
    %cst_111 = arith.constant dense<0.000000e+00> : vector<2x2xf32>
    %314 = tpu.matmul %310, %313, %cst_111 {dimension_numbers = #tpu.dot_dimension_numbers<[1], [0], [0], [1], [0, 0, 1, 1], [], []>} : vector<2x32xf32>, vector<32x2xf32>, vector<2x2xf32> -> vector<2x2xf32>
    %c16 = arith.constant 16 : index
    %c0_112 = arith.constant 0 : index
    %315 = vector.load %arg7[%c16, %c0_112] : memref<24x384xf32, #tpu.memory_space<vmem>>, vector<1x2xf32>
    %316 = vector.broadcast %315 : vector<1x2xf32> to vector<2x2xf32>
    %317 = arith.addf %314, %316 : vector<2x2xf32>
    %c0_113 = arith.constant 0 : index
    %c0_114 = arith.constant 0 : index
    %318 = vector.load %arg8[%c0_113, %c0_114] : memref<2x2xf32, #tpu.memory_space<vmem>>, vector<2x2xf32>
    tpu.vector_store %arg8[%c0_113, %c0_114], %317 {strides = array<i32>} : memref<2x2xf32, #tpu.memory_space<vmem>>, vector<2x2xf32>,
    return
  }
}

</mosaic_0001>

<llo_original>
// kernel: proformer_forward.1
$region0: #{proformer_forward.1}
  #allocation0 [shape = 'u32[]', space=smem, size = 0x4, offset = 0x4, fixed_abs, tag = 'smem constant byte address 0x4 - core index']
  #allocation1 [shape = 'u32[72,128]{1,0:T(1,128)}', space=vmem, size = 0x9000, scoped, tag = 'internal scratch']
  %s0 = inlined_call_operand.vmem [shape: f32[16,4], index: 0, kind: input, shape index: {}]
  %s1 = inlined_call_operand.vmem [shape: f32[16,2], index: 1, kind: input, shape index: {}]
  %s2 = inlined_call_operand.vmem [shape: s32[16,1], index: 2, kind: input, shape index: {}]
  %s3 = inlined_call_operand.vmem [shape: f32[128,32], index: 3, kind: input, shape index: {}]
  %s4 = inlined_call_operand.vmem [shape: f32[2,32,384], index: 4, kind: input, shape index: {}]
  %s5 = inlined_call_operand.vmem [shape: f32[2,32,256], index: 5, kind: input, shape index: {}]
  %s6 = inlined_call_operand.vmem [shape: f32[3,64,32], index: 6, kind: input, shape index: {}]
  %s7 = inlined_call_operand.hbm [shape: f32[24,384], index: 7, kind: input, shape index: {}]
  %s8 = inlined_call_operand.hbm [shape: f32[2,2], index: 8, kind: output, shape index: {}]
  %s9 = sld [smem:[#allocation0]]
  $region46: #{proformer_forward.1} parent=0
    _
  %s11 = ssub.s32 1, %s9
  %s12 = scalar_select 0, %s11, %s9
  $region1: #{proformer_forward.1} parent=0
    #allocation2 [shape = 'u8[36864]{0}', space=vmem, size = 0x9000, scoped, tag = 'input window, operand 7, single buffered']
    #allocation3 [shape = 's32[1]{0}', space=sflag, size = 0x4, scoped, tag = 'scoped memory for proformer_forward.1']
    #allocation4 [shape = 's32[1]{0}', space=sflag, size = 0x4, scoped, tag = 'scoped memory for proformer_forward.1']
    #allocation5 [shape = 'u8[1024]{0}', space=vmem, size = 0x400, scoped, tag = 'output window, operand 0, single buffered']
    %13 = vsyncpa [#allocation3], 0
    %14 = vsyncpa [#allocation4], 0
    // Predicated region
    $region2: #{proformer_forward.1} parent=1 // pred_check
      _
    $region3: #{proformer_forward.1} parent=1 // pred_check_branch
      %16 = sbr.rel (0) target = $region5
    $region4: #{proformer_forward.1} parent=1 // pred_region
      _
    $region5: #{proformer_forward.1} parent=1 // pred_fallthru
      _
    // Predicated region
    $region6: #{proformer_forward.1} parent=1 // pred_check
      _
    $region7: #{proformer_forward.1} parent=1 // pred_check_branch
      %18 = sbr.rel (0) target = $region9
    $region8: #{proformer_forward.1} parent=1 // pred_region
      _
    $region9: #{proformer_forward.1} parent=1 // pred_fallthru
      _
    // Predicated region
    $region10: #{proformer_forward.1} parent=1 // pred_check
      _
    $region11: #{proformer_forward.1} parent=1 // pred_check_branch
      %20 = sbr.rel (0) target = $region13
    $region12: #{proformer_forward.1} parent=1 // pred_region
      _
    $region13: #{proformer_forward.1} parent=1 // pred_fallthru
      _
    // Predicated region
    $region14: #{proformer_forward.1} parent=1 // pred_check
      _
    $region15: #{proformer_forward.1} parent=1 // pred_check_branch
      %22 = sbr.rel (0) target = $region17
    $region16: #{proformer_forward.1} parent=1 // pred_region
      _
    $region17: #{proformer_forward.1} parent=1 // pred_fallthru
      _
    // Predicated region
    $region18: #{proformer_forward.1} parent=1 // pred_check
      _
    $region19: #{proformer_forward.1} parent=1 // pred_check_branch
      %24 = sbr.rel (0) target = $region21
    $region20: #{proformer_forward.1} parent=1 // pred_region
      _
    $region21: #{proformer_forward.1} parent=1 // pred_fallthru
      _
    // Predicated region
    $region22: #{proformer_forward.1} parent=1 // pred_check
      _
    $region23: #{proformer_forward.1} parent=1 // pred_check_branch
      %26 = sbr.rel (0) target = $region25
    $region24: #{proformer_forward.1} parent=1 // pred_region
      _
    $region25: #{proformer_forward.1} parent=1 // pred_fallthru
      _
    // Predicated region
    $region26: #{proformer_forward.1} parent=1 // pred_check
      _
    $region27: #{proformer_forward.1} parent=1 // pred_check_branch
      %28 = sbr.rel (0) target = $region29
    $region28: #{proformer_forward.1} parent=1 // pred_region
      _
    $region29: #{proformer_forward.1} parent=1 // pred_fallthru
      _
    // Predicated region
    $region30: #{proformer_forward.1} parent=1 // pred_check
      _
    $region31: #{proformer_forward.1} parent=1 // pred_check_branch
      %30 = sbr.rel (0) target = $region33
    $region32: #{proformer_forward.1} parent=1 // pred_region
      %32 = vsyncadd [#allocation3], 0
      %s33 = sshll.u32 %s7, 4
      %s34 = int_to_ptr.hbm [resolvable:$true] %s33
      %s35 = sshll.u32 [#allocation2], 4
      %s36 = int_to_ptr.vmem [resolvable:$true] %s35
      %41 = dma.hbm_to_vmem [thread:$0]  %s34, 1152, %s36, [#allocation3], 384, 384, 24
    $region33: #{proformer_forward.1} parent=1 // pred_fallthru
      _
    // Predicated region
    $region34: #{proformer_forward.1} parent=1 // pred_check
      _
    $region35: #{proformer_forward.1} parent=1 // pred_check_branch
      %43 = sbr.rel (0) target = $region37
    $region36: #{proformer_forward.1} parent=1 // pred_region
      %45 = dma.done [#allocation3], 1152
    $region37: #{proformer_forward.1} parent=1 // pred_fallthru
      _
    %v46 = vld [vmem:[%s2] sm:$0xff]
    %v47 = vld [vmem:[%s2 + $0x8] sm:$0xff]
    %v48 = vlaneseq
    %v49 = vand.u32 %v48, 127
    %50 = vset.pattern.permute.xlu0 0
    %51 = vperm.xlu0 %50, %v46
    %v52 = vpop.permute.xlu0 %51
    %53 = vset.pattern.permute.xlu0 0
    %54 = vperm.xlu0 %53, %v47
    %v55 = vpop.permute.xlu0 %54
    %vm56 = vcmp.eq.s32.totalorder %v49, %v52
    %vm57 = vcmp.eq.s32.totalorder %v49, %v55
    %v58 = vsel %vm56, 1, 0
    %v59 = vsel %vm57, 1, 0
    %v60 = vcvt.s32.f32 %v58
    %v61 = vcvt.s32.f32 %v59
    %v62 = vld [vmem:[%s3] sm:$0xff]
    %v63 = vld [vmem:[%s3 + $0x8] sm:$0xff]
    %v64 = vld [vmem:[%s3 + $0x10] sm:$0xff]
    %v65 = vld [vmem:[%s3 + $0x18] sm:$0xff]
    %v66 = vld [vmem:[%s3 + $0x20] sm:$0xff]
    %v67 = vld [vmem:[%s3 + $0x28] sm:$0xff]
    %v68 = vld [vmem:[%s3 + $0x30] sm:$0xff]
    %v69 = vld [vmem:[%s3 + $0x38] sm:$0xff]
    %v70 = vld [vmem:[%s3 + $0x40] sm:$0xff]
    %v71 = vld [vmem:[%s3 + $0x48] sm:$0xff]
    %v72 = vld [vmem:[%s3 + $0x50] sm:$0xff]
    %v73 = vld [vmem:[%s3 + $0x58] sm:$0xff]
    %v74 = vld [vmem:[%s3 + $0x60] sm:$0xff]
    %v75 = vld [vmem:[%s3 + $0x68] sm:$0xff]
    %v76 = vld [vmem:[%s3 + $0x70] sm:$0xff]
    %v77 = vld [vmem:[%s3 + $0x78] sm:$0xff]
    %v78 = vld [vmem:[#allocation2 + $0x30] sm:$0x1e]
    %v79 = vld [vmem:[#allocation2 + $0x30] sm:$0x60]
    %v80 = vld [vmem:[%s0] sm:$0xff]
    %v81 = vld [vmem:[%s0 + $0x8] sm:$0xff]
    %v83 = vrot.slane %v78, 1
    %vm84 = vcmask 31744
    %v86 = vsel %vm84, %v80, 0
    %v89 = vsel %vm84, %v81, 0
    %vm91 = vcmask 1043456
    %v92 = vsel %vm91, %v83, 0
    %94 = vmatpush.msra.mxu0 0.0
    %95 = vmatpush.msra.mxu0 0.0
    %96 = vmatpush.msra.mxu0 0.0
    %97 = vmatpush.msra.mxu0 0.0
    %98 = vmatpush.msra.mxu0 0.0
    %99 = vmatpush.msra.mxu0 0.0
    %100 = vmatpush.msra.mxu0 0.0
    %101 = vmatpush.msra.mxu0 0.0
    %102 = vmatpush.msra.mxu0 0.0
    %103 = vmatpush.msra.mxu0 0.0
    %104 = vmatpush.msra.mxu0 0.0
    %105 = vmatpush.msra.mxu0 0.0
    %106 = vmatpush.msra.mxu0 0.0
    %107 = vmatpush.msra.mxu0 0.0
    %108 = vmatpush.msra.mxu0 0.0
    %109 = vmatpush.msra.mxu0 %v92
    %110 = vmatmul.f32.gmra.mxu0 %v86
    %v111 = vpop.f32.mrf.mxu0
    %v112 = vadd.f32 0.0, %v111
    %113 = vmatmul.f32.gmra.mxu0 %v89
    %v114 = vpop.f32.mrf.mxu0
    %v115 = vadd.f32 0.0, %v114
    %116 = vdwg.mxu0
    %117 = vmatpush.msra.mxu0 %v77
    %118 = vmatpush.msra.mxu0 %v76
    %119 = vmatpush.msra.mxu0 %v75
    %120 = vmatpush.msra.mxu0 %v74
    %121 = vmatpush.msra.mxu0 %v73
    %122 = vmatpush.msra.mxu0 %v72
    %123 = vmatpush.msra.mxu0 %v71
    %124 = vmatpush.msra.mxu0 %v70
    %125 = vmatpush.msra.mxu0 %v69
    %126 = vmatpush.msra.mxu0 %v68
    %127 = vmatpush.msra.mxu0 %v67
    %128 = vmatpush.msra.mxu0 %v66
    %129 = vmatpush.msra.mxu0 %v65
    %130 = vmatpush.msra.mxu0 %v64
    %131 = vmatpush.msra.mxu0 %v63
    %132 = vmatpush.msra.mxu0 %v62
    %133 = vmatmul.f32.gmra.mxu0 %v60
    %v134 = vpop.f32.mrf.mxu0
    %v135 = vadd.f32 %v112, %v134
    %136 = vmatmul.f32.gmra.mxu0 %v61
    %v137 = vpop.f32.mrf.mxu0
    %v138 = vadd.f32 %v115, %v137
    %139 = vdwg.mxu0
    %v140 = vld [vmem:[%s1] sm:$0xff]
    %v141 = vld [vmem:[%s1 + $0x8] sm:$0xff]
    %v143 = vrot.slane %v79, 5
    %vm144 = vcmask 15360
    %v146 = vsel %vm144, %v140, 0
    %v149 = vsel %vm144, %v141, 0
    %vm151 = vcmask 1041408
    %v152 = vsel %vm151, %v143, 0
    %154 = vmatpush.msra.mxu0 0.0
    %155 = vmatpush.msra.mxu0 0.0
    %156 = vmatpush.msra.mxu0 0.0
    %157 = vmatpush.msra.mxu0 0.0
    %158 = vmatpush.msra.mxu0 0.0
    %159 = vmatpush.msra.mxu0 0.0
    %160 = vmatpush.msra.mxu0 0.0
    %161 = vmatpush.msra.mxu0 0.0
    %162 = vmatpush.msra.mxu0 0.0
    %163 = vmatpush.msra.mxu0 0.0
    %164 = vmatpush.msra.mxu0 0.0
    %165 = vmatpush.msra.mxu0 0.0
    %166 = vmatpush.msra.mxu0 0.0
    %167 = vmatpush.msra.mxu0 0.0
    %168 = vmatpush.msra.mxu0 0.0
    %169 = vmatpush.msra.mxu0 %v152
    %170 = vmatmul.f32.gmra.mxu0 %v146
    %v171 = vpop.f32.mrf.mxu0
    %v172 = vadd.f32 0.0, %v171
    %173 = vmatmul.f32.gmra.mxu0 %v149
    %v174 = vpop.f32.mrf.mxu0
    %v175 = vadd.f32 0.0, %v174
    %176 = vdwg.mxu0
    %v177 = vadd.f32 %v135, %v172
    %v178 = vadd.f32 %v138, %v175
    %v179 = vld [vmem:[%s5] sm:$0xff]
    %v180 = vld [vmem:[%s5 + $0x8] sm:$0xff]
    %v181 = vld [vmem:[%s5 + $0x10] sm:$0xff]
    %v182 = vld [vmem:[%s5 + $0x18] sm:$0xff]
    %v183 = vld [vmem:[%s5 + $0x20] sm:$0xff]
    %v184 = vld [vmem:[%s5 + $0x28] sm:$0xff]
    %v185 = vld [vmem:[%s5 + $0x30] sm:$0xff]
    %v186 = vld [vmem:[%s5 + $0x38] sm:$0xff]
    %v187 = vld [vmem:[%s4] sm:$0xff]
    %v188 = vld [vmem:[%s4 + $0x8] sm:$0xff]
    %v189 = vld [vmem:[%s4 + $0x10] sm:$0xff]
    %v190 = vld [vmem:[%s4 + $0x18] sm:$0xff]
    %v191 = vld [vmem:[%s4 + $0x20] sm:$0xff]
    %v192 = vld [vmem:[%s4 + $0x28] sm:$0xff]
    %v193 = vld [vmem:[%s4 + $0x30] sm:$0xff]
    %v194 = vld [vmem:[%s4 + $0x38] sm:$0xff]
    %v195 = vld [vmem:[%s4 + $0x40] sm:$0xff]
    %v196 = vld [vmem:[%s4 + $0x48] sm:$0xff]
    %v197 = vld [vmem:[%s4 + $0x50] sm:$0xff]
    %v198 = vld [vmem:[%s4 + $0x58] sm:$0xff]
    %v199 = vld [vmem:[#allocation2] ss:$8 sm:$0x7]
    %v201 = vperm.slane %v199, 0
    %v202 = vperm.slane %v199, 1
    %v203 = vperm.slane %v199, 2
    %vm207 = vcmask 261120
    %v209 = vsel %vm207, %v177, 0
    %v212 = vsel %vm207, %v178, 0
    %214 = vmatpush.msra.mxu0 0.0
    %215 = vmatpush.msra.mxu0 0.0
    %216 = vmatpush.msra.mxu0 0.0
    %217 = vmatpush.msra.mxu0 0.0
    %218 = vmatpush.msra.mxu0 0.0
    %219 = vmatpush.msra.mxu0 0.0
    %220 = vmatpush.msra.mxu0 0.0
    %221 = vmatpush.msra.mxu0 0.0
    %222 = vmatpush.msra.mxu0 0.0
    %223 = vmatpush.msra.mxu0 0.0
    %224 = vmatpush.msra.mxu0 0.0
    %225 = vmatpush.msra.mxu0 0.0
    %226 = vmatpush.msra.mxu0 %v196
    %227 = vmatpush.msra.mxu0 %v193
    %228 = vmatpush.msra.mxu0 %v190
    %229 = vmatpush.msra.mxu0 %v187
    %230 = vmatmul.f32.gmra.mxu0 %v209
    %v231 = vpop.f32.mrf.mxu0
    %v232 = vadd.f32 %v201, %v231
    %233 = vmatmul.f32.gmra.mxu0 %v212
    %v234 = vpop.f32.mrf.mxu0
    %v235 = vadd.f32 %v201, %v234
    %236 = vdwg.mxu0
    %237 = vmatpush.msra.mxu0 0.0
    %238 = vmatpush.msra.mxu0 0.0
    %239 = vmatpush.msra.mxu0 0.0
    %240 = vmatpush.msra.mxu0 0.0
    %241 = vmatpush.msra.mxu0 0.0
    %242 = vmatpush.msra.mxu0 0.0
    %243 = vmatpush.msra.mxu0 0.0
    %244 = vmatpush.msra.mxu0 0.0
    %245 = vmatpush.msra.mxu0 0.0
    %246 = vmatpush.msra.mxu0 0.0
    %247 = vmatpush.msra.mxu0 0.0
    %248 = vmatpush.msra.mxu0 0.0
    %249 = vmatpush.msra.mxu0 %v197
    %250 = vmatpush.msra.mxu0 %v194
    %251 = vmatpush.msra.mxu0 %v191
    %252 = vmatpush.msra.mxu0 %v188
    %253 = vmatmul.f32.gmra.mxu0 %v209
    %v254 = vpop.f32.mrf.mxu0
    %v255 = vadd.f32 %v202, %v254
    %256 = vmatmul.f32.gmra.mxu0 %v212
    %v257 = vpop.f32.mrf.mxu0
    %v258 = vadd.f32 %v202, %v257
    %259 = vdwg.mxu0
    %260 = vmatpush.msra.mxu0 0.0
    %261 = vmatpush.msra.mxu0 0.0
    %262 = vmatpush.msra.mxu0 0.0
    %263 = vmatpush.msra.mxu0 0.0
    %264 = vmatpush.msra.mxu0 0.0
    %265 = vmatpush.msra.mxu0 0.0
    %266 = vmatpush.msra.mxu0 0.0
    %267 = vmatpush.msra.mxu0 0.0
    %268 = vmatpush.msra.mxu0 0.0
    %269 = vmatpush.msra.mxu0 0.0
    %270 = vmatpush.msra.mxu0 0.0
    %271 = vmatpush.msra.mxu0 0.0
    %272 = vmatpush.msra.mxu0 %v198
    %273 = vmatpush.msra.mxu0 %v195
    %274 = vmatpush.msra.mxu0 %v192
    %275 = vmatpush.msra.mxu0 %v189
    %276 = vmatmul.f32.gmra.mxu0 %v209
    %v277 = vpop.f32.mrf.mxu0
    %v278 = vadd.f32 %v203, %v277
    %279 = vmatmul.f32.gmra.mxu0 %v212
    %v280 = vpop.f32.mrf.mxu0
    %v281 = vadd.f32 %v203, %v280
    %282 = vdwg.mxu0
    %vm283 = vcmask 64512
    %v285 = vsel %vm283, %v232, 0
    %v288 = vsel %vm283, %v255, 0
    %290 = vmatpush.xpose.msra.mxu0 0.0
    %291 = vmatpush.xpose.msra.mxu0 0.0
    %292 = vmatpush.xpose.msra.mxu0 0.0
    %293 = vmatpush.xpose.msra.mxu0 0.0
    %294 = vmatpush.xpose.msra.mxu0 0.0
    %295 = vmatpush.xpose.msra.mxu0 0.0
    %296 = vmatpush.xpose.msra.mxu0 0.0
    %297 = vmatpush.xpose.msra.mxu0 0.0
    %298 = vmatpush.xpose.msra.mxu0 0.0
    %299 = vmatpush.xpose.msra.mxu0 0.0
    %300 = vmatpush.xpose.msra.mxu0 0.0
    %301 = vmatpush.xpose.msra.mxu0 0.0
    %302 = vmatpush.xpose.msra.mxu0 0.0
    %303 = vmatpush.xpose.msra.mxu0 0.0
    %304 = vmatpush.xpose.msra.mxu0 0.0
    %305 = vmatpush.xpose.msra.mxu0 %v288
    %306 = vmatmul.f32.gmra.mxu0 %v285
    %v307 = vpop.f32.mrf.mxu0
    %v308 = vadd.f32 0.0, %v307
    %309 = vdwg.mxu0
    %v311 = vsel %vm283, %v235, 0
    %v314 = vsel %vm283, %v258, 0
    %316 = vmatpush.xpose.msra.mxu0 0.0
    %317 = vmatpush.xpose.msra.mxu0 0.0
    %318 = vmatpush.xpose.msra.mxu0 0.0
    %319 = vmatpush.xpose.msra.mxu0 0.0
    %320 = vmatpush.xpose.msra.mxu0 0.0
    %321 = vmatpush.xpose.msra.mxu0 0.0
    %322 = vmatpush.xpose.msra.mxu0 0.0
    %323 = vmatpush.xpose.msra.mxu0 0.0
    %324 = vmatpush.xpose.msra.mxu0 0.0
    %325 = vmatpush.xpose.msra.mxu0 0.0
    %326 = vmatpush.xpose.msra.mxu0 0.0
    %327 = vmatpush.xpose.msra.mxu0 0.0
    %328 = vmatpush.xpose.msra.mxu0 0.0
    %329 = vmatpush.xpose.msra.mxu0 0.0
    %330 = vmatpush.xpose.msra.mxu0 0.0
    %331 = vmatpush.xpose.msra.mxu0 %v314
    %332 = vmatmul.f32.gmra.mxu0 %v311
    %v333 = vpop.f32.mrf.mxu0
    %v334 = vadd.f32 0.0, %v333
    %335 = vdwg.mxu0
    %v336 = vsel %vm283, %v308, -inf
    %337 = vmax.xlane.f32.xlu0 %v336
    %v338 = vpop.xlane.xlu0 %337
    %v339 = vsel %vm283, %v334, -inf
    %340 = vmax.xlane.f32.xlu0 %v339
    %v341 = vpop.xlane.xlu0 %340
    %v342 = vsub.f32 %v308, %v338
    %v343 = vsub.f32 %v334, %v341
    %v344 = vmul.f32 %v342, 1.442695
    %v345 = vpow.pop %v344
    %v346 = vmul.f32 %v343, 1.442695
    %v347 = vpow.pop %v346
    %v348 = vsel %vm283, %v345, 0.0
    %349 = vadd.xlane.f32.xlu0 %v348
    %v350 = vpop.xlane.xlu0 %349
    %v351 = vsel %vm283, %v347, 0.0
    %352 = vadd.xlane.f32.xlu0 %v351
    %v353 = vpop.xlane.xlu0 %352
    %v354 = vrcp.pop %v350
    %v355 = vrcp.pop %v353
    %v356 = vmul.f32 %v345, %v354
    %v357 = vmul.f32 %v347, %v355
    %v359 = vsel %vm283, %v356, 0
    %361 = vmatpush.msra.mxu0 0.0
    %362 = vmatpush.msra.mxu0 0.0
    %363 = vmatpush.msra.mxu0 0.0
    %364 = vmatpush.msra.mxu0 0.0
    %365 = vmatpush.msra.mxu0 0.0
    %366 = vmatpush.msra.mxu0 0.0
    %367 = vmatpush.msra.mxu0 0.0
    %368 = vmatpush.msra.mxu0 0.0
    %369 = vmatpush.msra.mxu0 0.0
    %370 = vmatpush.msra.mxu0 0.0
    %371 = vmatpush.msra.mxu0 0.0
    %372 = vmatpush.msra.mxu0 0.0
    %373 = vmatpush.msra.mxu0 0.0
    %374 = vmatpush.msra.mxu0 0.0
    %375 = vmatpush.msra.mxu0 0.0
    %376 = vmatpush.msra.mxu0 %v278
    %377 = vmatmul.f32.gmra.mxu0 %v359
    %v378 = vpop.f32.mrf.mxu0
    %v379 = vadd.f32 0.0, %v378
    %380 = vdwg.mxu0
    %v382 = vsel %vm283, %v357, 0
    %384 = vmatpush.msra.mxu0 0.0
    %385 = vmatpush.msra.mxu0 0.0
    %386 = vmatpush.msra.mxu0 0.0
    %387 = vmatpush.msra.mxu0 0.0
    %388 = vmatpush.msra.mxu0 0.0
    %389 = vmatpush.msra.mxu0 0.0
    %390 = vmatpush.msra.mxu0 0.0
    %391 = vmatpush.msra.mxu0 0.0
    %392 = vmatpush.msra.mxu0 0.0
    %393 = vmatpush.msra.mxu0 0.0
    %394 = vmatpush.msra.mxu0 0.0
    %395 = vmatpush.msra.mxu0 0.0
    %396 = vmatpush.msra.mxu0 0.0
    %397 = vmatpush.msra.mxu0 0.0
    %398 = vmatpush.msra.mxu0 0.0
    %399 = vmatpush.msra.mxu0 %v281
    %400 = vmatmul.f32.gmra.mxu0 %v382
    %v401 = vpop.f32.mrf.mxu0
    %v402 = vadd.f32 0.0, %v401
    %403 = vdwg.mxu0
    %404 = vrot.lane.b32.xlu0 %v232, 120
    %v405 = vpop.permute.xlu0 %404
    %406 = vrot.lane.b32.xlu0 %v255, 120
    %v407 = vpop.permute.xlu0 %406
    %v408 = vsel %vm283, %v405, 0
    %v410 = vsel %vm283, %v407, 0
    %412 = vmatpush.xpose.msra.mxu0 0.0
    %413 = vmatpush.xpose.msra.mxu0 0.0
    %414 = vmatpush.xpose.msra.mxu0 0.0
    %415 = vmatpush.xpose.msra.mxu0 0.0
    %416 = vmatpush.xpose.msra.mxu0 0.0
    %417 = vmatpush.xpose.msra.mxu0 0.0
    %418 = vmatpush.xpose.msra.mxu0 0.0
    %419 = vmatpush.xpose.msra.mxu0 0.0
    %420 = vmatpush.xpose.msra.mxu0 0.0
    %421 = vmatpush.xpose.msra.mxu0 0.0
    %422 = vmatpush.xpose.msra.mxu0 0.0
    %423 = vmatpush.xpose.msra.mxu0 0.0
    %424 = vmatpush.xpose.msra.mxu0 0.0
    %425 = vmatpush.xpose.msra.mxu0 0.0
    %426 = vmatpush.xpose.msra.mxu0 0.0
    %427 = vmatpush.xpose.msra.mxu0 %v410
    %428 = vmatmul.f32.gmra.mxu0 %v408
    %v429 = vpop.f32.mrf.mxu0
    %v430 = vadd.f32 0.0, %v429
    %431 = vdwg.mxu0
    %432 = vrot.lane.b32.xlu0 %v235, 120
    %v433 = vpop.permute.xlu0 %432
    %434 = vrot.lane.b32.xlu0 %v258, 120
    %v435 = vpop.permute.xlu0 %434
    %v436 = vsel %vm283, %v433, 0
    %v438 = vsel %vm283, %v435, 0
    %440 = vmatpush.xpose.msra.mxu0 0.0
    %441 = vmatpush.xpose.msra.mxu0 0.0
    %442 = vmatpush.xpose.msra.mxu0 0.0
    %443 = vmatpush.xpose.msra.mxu0 0.0
    %444 = vmatpush.xpose.msra.mxu0 0.0
    %445 = vmatpush.xpose.msra.mxu0 0.0
    %446 = vmatpush.xpose.msra.mxu0 0.0
    %447 = vmatpush.xpose.msra.mxu0 0.0
    %448 = vmatpush.xpose.msra.mxu0 0.0
    %449 = vmatpush.xpose.msra.mxu0 0.0
    %450 = vmatpush.xpose.msra.mxu0 0.0
    %451 = vmatpush.xpose.msra.mxu0 0.0
    %452 = vmatpush.xpose.msra.mxu0 0.0
    %453 = vmatpush.xpose.msra.mxu0 0.0
    %454 = vmatpush.xpose.msra.mxu0 0.0
    %455 = vmatpush.xpose.msra.mxu0 %v438
    %456 = vmatmul.f32.gmra.mxu0 %v436
    %v457 = vpop.f32.mrf.mxu0
    %v458 = vadd.f32 0.0, %v457
    %459 = vdwg.mxu0
    %v460 = vsel %vm283, %v430, -inf
    %461 = vmax.xlane.f32.xlu0 %v460
    %v462 = vpop.xlane.xlu0 %461
    %v463 = vsel %vm283, %v458, -inf
    %464 = vmax.xlane.f32.xlu0 %v463
    %v465 = vpop.xlane.xlu0 %464
    %v466 = vsub.f32 %v430, %v462
    %v467 = vsub.f32 %v458, %v465
    %v468 = vmul.f32 %v466, 1.442695
    %v469 = vpow.pop %v468
    %v470 = vmul.f32 %v467, 1.442695
    %v471 = vpow.pop %v470
    %v472 = vsel %vm283, %v469, 0.0
    %473 = vadd.xlane.f32.xlu0 %v472
    %v474 = vpop.xlane.xlu0 %473
    %v475 = vsel %vm283, %v471, 0.0
    %476 = vadd.xlane.f32.xlu0 %v475
    %v477 = vpop.xlane.xlu0 %476
    %v478 = vrcp.pop %v474
    %v479 = vrcp.pop %v477
    %v480 = vmul.f32 %v469, %v478
    %v481 = vmul.f32 %v471, %v479
    %483 = vrot.lane.b32.xlu0 %v278, 120
    %v484 = vpop.permute.xlu0 %483
    %v487 = vsel %vm283, %v480, 0
    %489 = vmatpush.msra.mxu0 0.0
    %490 = vmatpush.msra.mxu0 0.0
    %491 = vmatpush.msra.mxu0 0.0
    %492 = vmatpush.msra.mxu0 0.0
    %493 = vmatpush.msra.mxu0 0.0
    %494 = vmatpush.msra.mxu0 0.0
    %495 = vmatpush.msra.mxu0 0.0
    %496 = vmatpush.msra.mxu0 0.0
    %497 = vmatpush.msra.mxu0 0.0
    %498 = vmatpush.msra.mxu0 0.0
    %499 = vmatpush.msra.mxu0 0.0
    %500 = vmatpush.msra.mxu0 0.0
    %501 = vmatpush.msra.mxu0 0.0
    %502 = vmatpush.msra.mxu0 0.0
    %503 = vmatpush.msra.mxu0 0.0
    %504 = vmatpush.msra.mxu0 %v484
    %505 = vmatmul.f32.gmra.mxu0 %v487
    %v506 = vpop.f32.mrf.mxu0
    %v507 = vadd.f32 0.0, %v506
    %508 = vdwg.mxu0
    %510 = vrot.lane.b32.xlu0 %v281, 120
    %v511 = vpop.permute.xlu0 %510
    %v514 = vsel %vm283, %v481, 0
    %516 = vmatpush.msra.mxu0 0.0
    %517 = vmatpush.msra.mxu0 0.0
    %518 = vmatpush.msra.mxu0 0.0
    %519 = vmatpush.msra.mxu0 0.0
    %520 = vmatpush.msra.mxu0 0.0
    %521 = vmatpush.msra.mxu0 0.0
    %522 = vmatpush.msra.mxu0 0.0
    %523 = vmatpush.msra.mxu0 0.0
    %524 = vmatpush.msra.mxu0 0.0
    %525 = vmatpush.msra.mxu0 0.0
    %526 = vmatpush.msra.mxu0 0.0
    %527 = vmatpush.msra.mxu0 0.0
    %528 = vmatpush.msra.mxu0 0.0
    %529 = vmatpush.msra.mxu0 0.0
    %530 = vmatpush.msra.mxu0 0.0
    %531 = vmatpush.msra.mxu0 %v511
    %532 = vmatmul.f32.gmra.mxu0 %v514
    %v533 = vpop.f32.mrf.mxu0
    %v534 = vadd.f32 0.0, %v533
    %535 = vdwg.mxu0
    %536 = vrot.lane.b32.xlu0 %v232, 112
    %v537 = vpop.permute.xlu0 %536
    %538 = vrot.lane.b32.xlu0 %v255, 112
    %v539 = vpop.permute.xlu0 %538
    %v540 = vsel %vm283, %v537, 0
    %v542 = vsel %vm283, %v539, 0
    %544 = vmatpush.xpose.msra.mxu0 0.0
    %545 = vmatpush.xpose.msra.mxu0 0.0
    %546 = vmatpush.xpose.msra.mxu0 0.0
    %547 = vmatpush.xpose.msra.mxu0 0.0
    %548 = vmatpush.xpose.msra.mxu0 0.0
    %549 = vmatpush.xpose.msra.mxu0 0.0
    %550 = vmatpush.xpose.msra.mxu0 0.0
    %551 = vmatpush.xpose.msra.mxu0 0.0
    %552 = vmatpush.xpose.msra.mxu0 0.0
    %553 = vmatpush.xpose.msra.mxu0 0.0
    %554 = vmatpush.xpose.msra.mxu0 0.0
    %555 = vmatpush.xpose.msra.mxu0 0.0
    %556 = vmatpush.xpose.msra.mxu0 0.0
    %557 = vmatpush.xpose.msra.mxu0 0.0
    %558 = vmatpush.xpose.msra.mxu0 0.0
    %559 = vmatpush.xpose.msra.mxu0 %v542
    %560 = vmatmul.f32.gmra.mxu0 %v540
    %v561 = vpop.f32.mrf.mxu0
    %v562 = vadd.f32 0.0, %v561
    %563 = vdwg.mxu0
    %564 = vrot.lane.b32.xlu0 %v235, 112
    %v565 = vpop.permute.xlu0 %564
    %566 = vrot.lane.b32.xlu0 %v258, 112
    %v567 = vpop.permute.xlu0 %566
    %v568 = vsel %vm283, %v565, 0
    %v570 = vsel %vm283, %v567, 0
    %572 = vmatpush.xpose.msra.mxu0 0.0
    %573 = vmatpush.xpose.msra.mxu0 0.0
    %574 = vmatpush.xpose.msra.mxu0 0.0
    %575 = vmatpush.xpose.msra.mxu0 0.0
    %576 = vmatpush.xpose.msra.mxu0 0.0
    %577 = vmatpush.xpose.msra.mxu0 0.0
    %578 = vmatpush.xpose.msra.mxu0 0.0
    %579 = vmatpush.xpose.msra.mxu0 0.0
    %580 = vmatpush.xpose.msra.mxu0 0.0
    %581 = vmatpush.xpose.msra.mxu0 0.0
    %582 = vmatpush.xpose.msra.mxu0 0.0
    %583 = vmatpush.xpose.msra.mxu0 0.0
    %584 = vmatpush.xpose.msra.mxu0 0.0
    %585 = vmatpush.xpose.msra.mxu0 0.0
    %586 = vmatpush.xpose.msra.mxu0 0.0
    %587 = vmatpush.xpose.msra.mxu0 %v570
    %588 = vmatmul.f32.gmra.mxu0 %v568
    %v589 = vpop.f32.mrf.mxu0
    %v590 = vadd.f32 0.0, %v589
    %591 = vdwg.mxu0
    %v592 = vsel %vm283, %v562, -inf
    %593 = vmax.xlane.f32.xlu0 %v592
    %v594 = vpop.xlane.xlu0 %593
    %v595 = vsel %vm283, %v590, -inf
    %596 = vmax.xlane.f32.xlu0 %v595
    %v597 = vpop.xlane.xlu0 %596
    %v598 = vsub.f32 %v562, %v594
    %v599 = vsub.f32 %v590, %v597
    %v600 = vmul.f32 %v598, 1.442695
    %v601 = vpow.pop %v600
    %v602 = vmul.f32 %v599, 1.442695
    %v603 = vpow.pop %v602
    %v604 = vsel %vm283, %v601, 0.0
    %605 = vadd.xlane.f32.xlu0 %v604
    %v606 = vpop.xlane.xlu0 %605
    %v607 = vsel %vm283, %v603, 0.0
    %608 = vadd.xlane.f32.xlu0 %v607
    %v609 = vpop.xlane.xlu0 %608
    %v610 = vrcp.pop %v606
    %v611 = vrcp.pop %v609
    %v612 = vmul.f32 %v601, %v610
    %v613 = vmul.f32 %v603, %v611
    %614 = vrot.lane.b32.xlu0 %v278, 112
    %v615 = vpop.permute.xlu0 %614
    %v618 = vsel %vm283, %v612, 0
    %620 = vmatpush.msra.mxu0 0.0
    %621 = vmatpush.msra.mxu0 0.0
    %622 = vmatpush.msra.mxu0 0.0
    %623 = vmatpush.msra.mxu0 0.0
    %624 = vmatpush.msra.mxu0 0.0
    %625 = vmatpush.msra.mxu0 0.0
    %626 = vmatpush.msra.mxu0 0.0
    %627 = vmatpush.msra.mxu0 0.0
    %628 = vmatpush.msra.mxu0 0.0
    %629 = vmatpush.msra.mxu0 0.0
    %630 = vmatpush.msra.mxu0 0.0
    %631 = vmatpush.msra.mxu0 0.0
    %632 = vmatpush.msra.mxu0 0.0
    %633 = vmatpush.msra.mxu0 0.0
    %634 = vmatpush.msra.mxu0 0.0
    %635 = vmatpush.msra.mxu0 %v615
    %636 = vmatmul.f32.gmra.mxu0 %v618
    %v637 = vpop.f32.mrf.mxu0
    %v638 = vadd.f32 0.0, %v637
    %639 = vdwg.mxu0
    %640 = vrot.lane.b32.xlu0 %v281, 112
    %v641 = vpop.permute.xlu0 %640
    %v644 = vsel %vm283, %v613, 0
    %646 = vmatpush.msra.mxu0 0.0
    %647 = vmatpush.msra.mxu0 0.0
    %648 = vmatpush.msra.mxu0 0.0
    %649 = vmatpush.msra.mxu0 0.0
    %650 = vmatpush.msra.mxu0 0.0
    %651 = vmatpush.msra.mxu0 0.0
    %652 = vmatpush.msra.mxu0 0.0
    %653 = vmatpush.msra.mxu0 0.0
    %654 = vmatpush.msra.mxu0 0.0
    %655 = vmatpush.msra.mxu0 0.0
    %656 = vmatpush.msra.mxu0 0.0
    %657 = vmatpush.msra.mxu0 0.0
    %658 = vmatpush.msra.mxu0 0.0
    %659 = vmatpush.msra.mxu0 0.0
    %660 = vmatpush.msra.mxu0 0.0
    %661 = vmatpush.msra.mxu0 %v641
    %662 = vmatmul.f32.gmra.mxu0 %v644
    %v663 = vpop.f32.mrf.mxu0
    %v664 = vadd.f32 0.0, %v663
    %665 = vdwg.mxu0
    %666 = vrot.lane.b32.xlu0 %v232, 104
    %v667 = vpop.permute.xlu0 %666
    %668 = vrot.lane.b32.xlu0 %v255, 104
    %v669 = vpop.permute.xlu0 %668
    %v670 = vsel %vm283, %v667, 0
    %v672 = vsel %vm283, %v669, 0
    %674 = vmatpush.xpose.msra.mxu0 0.0
    %675 = vmatpush.xpose.msra.mxu0 0.0
    %676 = vmatpush.xpose.msra.mxu0 0.0
    %677 = vmatpush.xpose.msra.mxu0 0.0
    %678 = vmatpush.xpose.msra.mxu0 0.0
    %679 = vmatpush.xpose.msra.mxu0 0.0
    %680 = vmatpush.xpose.msra.mxu0 0.0
    %681 = vmatpush.xpose.msra.mxu0 0.0
    %682 = vmatpush.xpose.msra.mxu0 0.0
    %683 = vmatpush.xpose.msra.mxu0 0.0
    %684 = vmatpush.xpose.msra.mxu0 0.0
    %685 = vmatpush.xpose.msra.mxu0 0.0
    %686 = vmatpush.xpose.msra.mxu0 0.0
    %687 = vmatpush.xpose.msra.mxu0 0.0
    %688 = vmatpush.xpose.msra.mxu0 0.0
    %689 = vmatpush.xpose.msra.mxu0 %v672
    %690 = vmatmul.f32.gmra.mxu0 %v670
    %v691 = vpop.f32.mrf.mxu0
    %v692 = vadd.f32 0.0, %v691
    %693 = vdwg.mxu0
    %694 = vrot.lane.b32.xlu0 %v235, 104
    %v695 = vpop.permute.xlu0 %694
    %696 = vrot.lane.b32.xlu0 %v258, 104
    %v697 = vpop.permute.xlu0 %696
    %v698 = vsel %vm283, %v695, 0
    %v700 = vsel %vm283, %v697, 0
    %702 = vmatpush.xpose.msra.mxu0 0.0
    %703 = vmatpush.xpose.msra.mxu0 0.0
    %704 = vmatpush.xpose.msra.mxu0 0.0
    %705 = vmatpush.xpose.msra.mxu0 0.0
    %706 = vmatpush.xpose.msra.mxu0 0.0
    %707 = vmatpush.xpose.msra.mxu0 0.0
    %708 = vmatpush.xpose.msra.mxu0 0.0
    %709 = vmatpush.xpose.msra.mxu0 0.0
    %710 = vmatpush.xpose.msra.mxu0 0.0
    %711 = vmatpush.xpose.msra.mxu0 0.0
    %712 = vmatpush.xpose.msra.mxu0 0.0
    %713 = vmatpush.xpose.msra.mxu0 0.0
    %714 = vmatpush.xpose.msra.mxu0 0.0
    %715 = vmatpush.xpose.msra.mxu0 0.0
    %716 = vmatpush.xpose.msra.mxu0 0.0
    %717 = vmatpush.xpose.msra.mxu0 %v700
    %718 = vmatmul.f32.gmra.mxu0 %v698
    %v719 = vpop.f32.mrf.mxu0
    %v720 = vadd.f32 0.0, %v719
    %721 = vdwg.mxu0
    %v722 = vsel %vm283, %v692, -inf
    %723 = vmax.xlane.f32.xlu0 %v722
    %v724 = vpop.xlane.xlu0 %723
    %v725 = vsel %vm283, %v720, -inf
    %726 = vmax.xlane.f32.xlu0 %v725
    %v727 = vpop.xlane.xlu0 %726
    %v728 = vsub.f32 %v692, %v724
    %v729 = vsub.f32 %v720, %v727
    %v730 = vmul.f32 %v728, 1.442695
    %v731 = vpow.pop %v730
    %v732 = vmul.f32 %v729, 1.442695
    %v733 = vpow.pop %v732
    %v734 = vsel %vm283, %v731, 0.0
    %735 = vadd.xlane.f32.xlu0 %v734
    %v736 = vpop.xlane.xlu0 %735
    %v737 = vsel %vm283, %v733, 0.0
    %738 = vadd.xlane.f32.xlu0 %v737
    %v739 = vpop.xlane.xlu0 %738
    %v740 = vrcp.pop %v736
    %v741 = vrcp.pop %v739
    %v742 = vmul.f32 %v731, %v740
    %v743 = vmul.f32 %v733, %v741
    %744 = vrot.lane.b32.xlu0 %v278, 104
    %v745 = vpop.permute.xlu0 %744
    %v748 = vsel %vm283, %v742, 0
    %750 = vmatpush.msra.mxu0 0.0
    %751 = vmatpush.msra.mxu0 0.0
    %752 = vmatpush.msra.mxu0 0.0
    %753 = vmatpush.msra.mxu0 0.0
    %754 = vmatpush.msra.mxu0 0.0
    %755 = vmatpush.msra.mxu0 0.0
    %756 = vmatpush.msra.mxu0 0.0
    %757 = vmatpush.msra.mxu0 0.0
    %758 = vmatpush.msra.mxu0 0.0
    %759 = vmatpush.msra.mxu0 0.0
    %760 = vmatpush.msra.mxu0 0.0
    %761 = vmatpush.msra.mxu0 0.0
    %762 = vmatpush.msra.mxu0 0.0
    %763 = vmatpush.msra.mxu0 0.0
    %764 = vmatpush.msra.mxu0 0.0
    %765 = vmatpush.msra.mxu0 %v745
    %766 = vmatmul.f32.gmra.mxu0 %v748
    %v767 = vpop.f32.mrf.mxu0
    %v768 = vadd.f32 0.0, %v767
    %769 = vdwg.mxu0
    %770 = vrot.lane.b32.xlu0 %v281, 104
    %v771 = vpop.permute.xlu0 %770
    %v774 = vsel %vm283, %v743, 0
    %776 = vmatpush.msra.mxu0 0.0
    %777 = vmatpush.msra.mxu0 0.0
    %778 = vmatpush.msra.mxu0 0.0
    %779 = vmatpush.msra.mxu0 0.0
    %780 = vmatpush.msra.mxu0 0.0
    %781 = vmatpush.msra.mxu0 0.0
    %782 = vmatpush.msra.mxu0 0.0
    %783 = vmatpush.msra.mxu0 0.0
    %784 = vmatpush.msra.mxu0 0.0
    %785 = vmatpush.msra.mxu0 0.0
    %786 = vmatpush.msra.mxu0 0.0
    %787 = vmatpush.msra.mxu0 0.0
    %788 = vmatpush.msra.mxu0 0.0
    %789 = vmatpush.msra.mxu0 0.0
    %790 = vmatpush.msra.mxu0 0.0
    %791 = vmatpush.msra.mxu0 %v771
    %792 = vmatmul.f32.gmra.mxu0 %v774
    %v793 = vpop.f32.mrf.mxu0
    %v794 = vadd.f32 0.0, %v793
    %795 = vdwg.mxu0
    %798 = vrot.lane.b32.xlu0 %v507, 8
    %v799 = vpop.permute.xlu0 %798
    %800 = vrot.lane.b32.xlu0 %v534, 8
    %v801 = vpop.permute.xlu0 %800
    %806 = vrot.lane.b32.xlu0 %v638, 16
    %v807 = vpop.permute.xlu0 %806
    %808 = vrot.lane.b32.xlu0 %v664, 16
    %v809 = vpop.permute.xlu0 %808
    %814 = vrot.lane.b32.xlu0 %v768, 24
    %v815 = vpop.permute.xlu0 %814
    %816 = vrot.lane.b32.xlu0 %v794, 24
    %v817 = vpop.permute.xlu0 %816
    %v820 = vsel %vm283, %v379, %v799
    %v821 = vsel %vm283, %v402, %v801
    %vm822 = vcmask 130048
    %v823 = vsel %vm822, %v820, %v807
    %v824 = vsel %vm822, %v821, %v809
    %vm825 = vcmask 195584
    %v826 = vsel %vm825, %v823, %v815
    %v827 = vsel %vm825, %v824, %v817
    %v828 = vld [vmem:[#allocation2 + $0x1] ss:$0 sm:$0xff]
    %v830 = vsel %vm207, %v826, 0
    %v833 = vsel %vm207, %v827, 0
    %835 = vmatpush.msra.mxu0 0.0
    %836 = vmatpush.msra.mxu0 0.0
    %837 = vmatpush.msra.mxu0 0.0
    %838 = vmatpush.msra.mxu0 0.0
    %839 = vmatpush.msra.mxu0 0.0
    %840 = vmatpush.msra.mxu0 0.0
    %841 = vmatpush.msra.mxu0 0.0
    %842 = vmatpush.msra.mxu0 0.0
    %843 = vmatpush.msra.mxu0 0.0
    %844 = vmatpush.msra.mxu0 0.0
    %845 = vmatpush.msra.mxu0 0.0
    %846 = vmatpush.msra.mxu0 0.0
    %847 = vmatpush.msra.mxu0 %v185
    %848 = vmatpush.msra.mxu0 %v183
    %849 = vmatpush.msra.mxu0 %v181
    %850 = vmatpush.msra.mxu0 %v179
    %851 = vmatmul.f32.gmra.mxu0 %v830
    %v852 = vpop.f32.mrf.mxu0
    %v853 = vadd.f32 %v828, %v852
    %854 = vmatmul.f32.gmra.mxu0 %v833
    %v855 = vpop.f32.mrf.mxu0
    %v856 = vadd.f32 %v828, %v855
    %857 = vdwg.mxu0
    %v858 = vadd.f32 %v177, %v853
    %v859 = vadd.f32 %v178, %v856
    %v860 = vld [vmem:[#allocation2 + $0x2] ss:$0 sm:$0xff]
    %v861 = vld [vmem:[#allocation2 + $0x3] ss:$0 sm:$0xff]
    %v862 = vsel %vm207, %v858, 0.0
    %863 = vadd.xlane.f32.xlu0 %v862
    %v864 = vpop.xlane.xlu0 %863
    %v865 = vsel %vm207, %v859, 0.0
    %866 = vadd.xlane.f32.xlu0 %v865
    %v867 = vpop.xlane.xlu0 %866
    %v868 = vrcp.pop 32.0
    %v869 = vmul.f32 32.0, %v868
    %v870 = vsub.f32 1.0, %v869
    %v871 = vmul.f32 %v868, %v870
    %v872 = vadd.f32 %v868, %v871
    %vm873 = vweird.f32 %v868
    %v874 = vsel %vm873, %v868, %v872
    %v875 = vmul.f32 %v864, %v874
    %v876 = vmul.f32 %v867, %v874
    %v877 = vmul.f32 %v858, %v858
    %v878 = vmul.f32 %v859, %v859
    %v879 = vsel %vm207, %v877, 0.0
    %880 = vadd.xlane.f32.xlu0 %v879
    %v881 = vpop.xlane.xlu0 %880
    %v882 = vsel %vm207, %v878, 0.0
    %883 = vadd.xlane.f32.xlu0 %v882
    %v884 = vpop.xlane.xlu0 %883
    %v885 = vmul.f32 %v881, %v874
    %v886 = vmul.f32 %v884, %v874
    %v887 = vmul.f32 %v875, %v875
    %v888 = vmul.f32 %v876, %v876
    %v889 = vsub.f32 %v885, %v887
    %v890 = vsub.f32 %v886, %v888
    %v891 = vadd.f32 %v889, 1e-05
    %v892 = vadd.f32 %v890, 1e-05
    %v893 = vrsqrt.pop %v891
    %v894 = vmul.f32 %v893, %v891
    %v895 = vmul.f32 %v894, %v893
    %v896 = vmul.f32 0.5, %v895
    %v897 = vsub.f32 1.5, %v896
    %v898 = vmul.f32 %v893, %v897
    %vm899 = vweird.f32 %v891
    %vm900 = vweird.f32 %v893
    %vm901 = vmor %vm899, %vm900
    %v902 = vsel %vm901, %v893, %v898
    %v903 = vrsqrt.pop %v892
    %v904 = vmul.f32 %v903, %v892
    %v905 = vmul.f32 %v904, %v903
    %v906 = vmul.f32 0.5, %v905
    %v907 = vsub.f32 1.5, %v906
    %v908 = vmul.f32 %v903, %v907
    %vm909 = vweird.f32 %v892
    %vm910 = vweird.f32 %v903
    %vm911 = vmor %vm909, %vm910
    %v912 = vsel %vm911, %v903, %v908
    %v913 = vmul.f32 %v860, %v902
    %v914 = vmul.f32 %v860, %v912
    %v915 = vmul.f32 %v858, %v913
    %v916 = vmul.f32 %v859, %v914
    %v917 = vmul.f32 %v875, %v913
    %v918 = vmul.f32 %v876, %v914
    %v919 = vsub.f32 %v861, %v917
    %v920 = vsub.f32 %v861, %v918
    %v921 = vadd.f32 %v915, %v919
    %v922 = vadd.f32 %v916, %v920
    %v923 = vld [vmem:[#allocation2 + $0x4] ss:$0 sm:$0xff]
    %v925 = vsel %vm207, %v921, 0
    %v928 = vsel %vm207, %v922, 0
    %930 = vmatpush.msra.mxu0 0.0
    %931 = vmatpush.msra.mxu0 0.0
    %932 = vmatpush.msra.mxu0 0.0
    %933 = vmatpush.msra.mxu0 0.0
    %934 = vmatpush.msra.mxu0 0.0
    %935 = vmatpush.msra.mxu0 0.0
    %936 = vmatpush.msra.mxu0 0.0
    %937 = vmatpush.msra.mxu0 0.0
    %938 = vmatpush.msra.mxu0 0.0
    %939 = vmatpush.msra.mxu0 0.0
    %940 = vmatpush.msra.mxu0 0.0
    %941 = vmatpush.msra.mxu0 0.0
    %942 = vmatpush.msra.mxu0 %v186
    %943 = vmatpush.msra.mxu0 %v184
    %944 = vmatpush.msra.mxu0 %v182
    %945 = vmatpush.msra.mxu0 %v180
    %946 = vmatmul.f32.gmra.mxu0 %v925
    %v947 = vpop.f32.mrf.mxu0
    %v948 = vadd.f32 %v923, %v947
    %949 = vmatmul.f32.gmra.mxu0 %v928
    %v950 = vpop.f32.mrf.mxu0
    %v951 = vadd.f32 %v923, %v950
    %952 = vdwg.mxu0
    %v953 = vmax.f32 %v948, 0.0
    %v954 = vmax.f32 %v951, 0.0
    %v955 = vld [vmem:[%s6] sm:$0xff]
    %v956 = vld [vmem:[%s6 + $0x8] sm:$0xff]
    %v957 = vld [vmem:[%s6 + $0x10] sm:$0xff]
    %v958 = vld [vmem:[%s6 + $0x18] sm:$0xff]
    %v959 = vld [vmem:[%s6 + $0x20] sm:$0xff]
    %v960 = vld [vmem:[%s6 + $0x28] sm:$0xff]
    %v961 = vld [vmem:[%s6 + $0x30] sm:$0xff]
    %v962 = vld [vmem:[%s6 + $0x38] sm:$0xff]
    %v963 = vld [vmem:[#allocation2 + $0x5] ss:$0 sm:$0xff]
    %vm964 = vcmask 523264
    %v966 = vsel %vm964, %v953, 0
    %v969 = vsel %vm964, %v954, 0
    %971 = vmatpush.msra.mxu0 0.0
    %972 = vmatpush.msra.mxu0 0.0
    %973 = vmatpush.msra.mxu0 0.0
    %974 = vmatpush.msra.mxu0 0.0
    %975 = vmatpush.msra.mxu0 0.0
    %976 = vmatpush.msra.mxu0 0.0
    %977 = vmatpush.msra.mxu0 0.0
    %978 = vmatpush.msra.mxu0 0.0
    %979 = vmatpush.msra.mxu0 %v962
    %980 = vmatpush.msra.mxu0 %v961
    %981 = vmatpush.msra.mxu0 %v960
    %982 = vmatpush.msra.mxu0 %v959
    %983 = vmatpush.msra.mxu0 %v958
    %984 = vmatpush.msra.mxu0 %v957
    %985 = vmatpush.msra.mxu0 %v956
    %986 = vmatpush.msra.mxu0 %v955
    %987 = vmatmul.f32.gmra.mxu0 %v966
    %v988 = vpop.f32.mrf.mxu0
    %v989 = vadd.f32 %v963, %v988
    %990 = vmatmul.f32.gmra.mxu0 %v969
    %v991 = vpop.f32.mrf.mxu0
    %v992 = vadd.f32 %v963, %v991
    %993 = vdwg.mxu0
    %v994 = vadd.f32 %v921, %v989
    %v995 = vadd.f32 %v922, %v992
    %v996 = vld [vmem:[#allocation2 + $0x6] ss:$0 sm:$0xff]
    %v997 = vld [vmem:[#allocation2 + $0x7] ss:$0 sm:$0xff]
    %v998 = vsel %vm207, %v994, 0.0
    %999 = vadd.xlane.f32.xlu0 %v998
    %v1000 = vpop.xlane.xlu0 %999
    %v1001 = vsel %vm207, %v995, 0.0
    %1002 = vadd.xlane.f32.xlu0 %v1001
    %v1003 = vpop.xlane.xlu0 %1002
    %v1004 = vmul.f32 %v1000, %v874
    %v1005 = vmul.f32 %v1003, %v874
    %v1006 = vmul.f32 %v994, %v994
    %v1007 = vmul.f32 %v995, %v995
    %v1008 = vsel %vm207, %v1006, 0.0
    %1009 = vadd.xlane.f32.xlu0 %v1008
    %v1010 = vpop.xlane.xlu0 %1009
    %v1011 = vsel %vm207, %v1007, 0.0
    %1012 = vadd.xlane.f32.xlu0 %v1011
    %v1013 = vpop.xlane.xlu0 %1012
    %v1014 = vmul.f32 %v1010, %v874
    %v1015 = vmul.f32 %v1013, %v874
    %v1016 = vmul.f32 %v1004, %v1004
    %v1017 = vmul.f32 %v1005, %v1005
    %v1018 = vsub.f32 %v1014, %v1016
    %v1019 = vsub.f32 %v1015, %v1017
    %v1020 = vadd.f32 %v1018, 1e-05
    %v1021 = vadd.f32 %v1019, 1e-05
    %v1022 = vrsqrt.pop %v1020
    %v1023 = vmul.f32 %v1022, %v1020
    %v1024 = vmul.f32 %v1023, %v1022
    %v1025 = vmul.f32 0.5, %v1024
    %v1026 = vsub.f32 1.5, %v1025
    %v1027 = vmul.f32 %v1022, %v1026
    %vm1028 = vweird.f32 %v1020
    %vm1029 = vweird.f32 %v1022
    %vm1030 = vmor %vm1028, %vm1029
    %v1031 = vsel %vm1030, %v1022, %v1027
    %v1032 = vrsqrt.pop %v1021
    %v1033 = vmul.f32 %v1032, %v1021
    %v1034 = vmul.f32 %v1033, %v1032
    %v1035 = vmul.f32 0.5, %v1034
    %v1036 = vsub.f32 1.5, %v1035
    %v1037 = vmul.f32 %v1032, %v1036
    %vm1038 = vweird.f32 %v1021
    %vm1039 = vweird.f32 %v1032
    %vm1040 = vmor %vm1038, %vm1039
    %v1041 = vsel %vm1040, %v1032, %v1037
    %v1042 = vmul.f32 %v996, %v1031
    %v1043 = vmul.f32 %v996, %v1041
    %v1044 = vmul.f32 %v994, %v1042
    %v1045 = vmul.f32 %v995, %v1043
    %v1046 = vmul.f32 %v1004, %v1042
    %v1047 = vmul.f32 %v1005, %v1043
    %v1048 = vsub.f32 %v997, %v1046
    %v1049 = vsub.f32 %v997, %v1047
    %v1050 = vadd.f32 %v1044, %v1048
    %v1051 = vadd.f32 %v1045, %v1049
    %s1052 = scalar_lea.vmem %s5, 64
    %v1053 = vld [vmem:[%s1052] sm:$0xff]
    %v1054 = vld [vmem:[%s1052 + $0x8] sm:$0xff]
    %v1055 = vld [vmem:[%s1052 + $0x10] sm:$0xff]
    %v1056 = vld [vmem:[%s1052 + $0x18] sm:$0xff]
    %v1057 = vld [vmem:[%s1052 + $0x20] sm:$0xff]
    %v1058 = vld [vmem:[%s1052 + $0x28] sm:$0xff]
    %v1059 = vld [vmem:[%s1052 + $0x30] sm:$0xff]
    %v1060 = vld [vmem:[%s1052 + $0x38] sm:$0xff]
    %s1061 = scalar_lea.vmem %s4, 96
    %v1062 = vld [vmem:[%s1061] sm:$0xff]
    %v1063 = vld [vmem:[%s1061 + $0x8] sm:$0xff]
    %v1064 = vld [vmem:[%s1061 + $0x10] sm:$0xff]
    %v1065 = vld [vmem:[%s1061 + $0x18] sm:$0xff]
    %v1066 = vld [vmem:[%s1061 + $0x20] sm:$0xff]
    %v1067 = vld [vmem:[%s1061 + $0x28] sm:$0xff]
    %v1068 = vld [vmem:[%s1061 + $0x30] sm:$0xff]
    %v1069 = vld [vmem:[%s1061 + $0x38] sm:$0xff]
    %v1070 = vld [vmem:[%s1061 + $0x40] sm:$0xff]
    %v1071 = vld [vmem:[%s1061 + $0x48] sm:$0xff]
    %v1072 = vld [vmem:[%s1061 + $0x50] sm:$0xff]
    %v1073 = vld [vmem:[%s1061 + $0x58] sm:$0xff]
    %s1074 = scalar_lea.vmem [#allocation2], 24
    %v1075 = vld [vmem:[%s1074] ss:$8 sm:$0x7]
    %v1077 = vperm.slane %v1075, 0
    %v1078 = vperm.slane %v1075, 1
    %v1079 = vperm.slane %v1075, 2
    %v1084 = vsel %vm207, %v1050, 0
    %v1087 = vsel %vm207, %v1051, 0
    %1089 = vmatpush.msra.mxu0 0.0
    %1090 = vmatpush.msra.mxu0 0.0
    %1091 = vmatpush.msra.mxu0 0.0
    %1092 = vmatpush.msra.mxu0 0.0
    %1093 = vmatpush.msra.mxu0 0.0
    %1094 = vmatpush.msra.mxu0 0.0
    %1095 = vmatpush.msra.mxu0 0.0
    %1096 = vmatpush.msra.mxu0 0.0
    %1097 = vmatpush.msra.mxu0 0.0
    %1098 = vmatpush.msra.mxu0 0.0
    %1099 = vmatpush.msra.mxu0 0.0
    %1100 = vmatpush.msra.mxu0 0.0
    %1101 = vmatpush.msra.mxu0 %v1071
    %1102 = vmatpush.msra.mxu0 %v1068
    %1103 = vmatpush.msra.mxu0 %v1065
    %1104 = vmatpush.msra.mxu0 %v1062
    %1105 = vmatmul.f32.gmra.mxu0 %v1084
    %v1106 = vpop.f32.mrf.mxu0
    %v1107 = vadd.f32 %v1077, %v1106
    %1108 = vmatmul.f32.gmra.mxu0 %v1087
    %v1109 = vpop.f32.mrf.mxu0
    %v1110 = vadd.f32 %v1077, %v1109
    %1111 = vdwg.mxu0
    %1112 = vmatpush.msra.mxu0 0.0
    %1113 = vmatpush.msra.mxu0 0.0
    %1114 = vmatpush.msra.mxu0 0.0
    %1115 = vmatpush.msra.mxu0 0.0
    %1116 = vmatpush.msra.mxu0 0.0
    %1117 = vmatpush.msra.mxu0 0.0
    %1118 = vmatpush.msra.mxu0 0.0
    %1119 = vmatpush.msra.mxu0 0.0
    %1120 = vmatpush.msra.mxu0 0.0
    %1121 = vmatpush.msra.mxu0 0.0
    %1122 = vmatpush.msra.mxu0 0.0
    %1123 = vmatpush.msra.mxu0 0.0
    %1124 = vmatpush.msra.mxu0 %v1072
    %1125 = vmatpush.msra.mxu0 %v1069
    %1126 = vmatpush.msra.mxu0 %v1066
    %1127 = vmatpush.msra.mxu0 %v1063
    %1128 = vmatmul.f32.gmra.mxu0 %v1084
    %v1129 = vpop.f32.mrf.mxu0
    %v1130 = vadd.f32 %v1078, %v1129
    %1131 = vmatmul.f32.gmra.mxu0 %v1087
    %v1132 = vpop.f32.mrf.mxu0
    %v1133 = vadd.f32 %v1078, %v1132
    %1134 = vdwg.mxu0
    %1135 = vmatpush.msra.mxu0 0.0
    %1136 = vmatpush.msra.mxu0 0.0
    %1137 = vmatpush.msra.mxu0 0.0
    %1138 = vmatpush.msra.mxu0 0.0
    %1139 = vmatpush.msra.mxu0 0.0
    %1140 = vmatpush.msra.mxu0 0.0
    %1141 = vmatpush.msra.mxu0 0.0
    %1142 = vmatpush.msra.mxu0 0.0
    %1143 = vmatpush.msra.mxu0 0.0
    %1144 = vmatpush.msra.mxu0 0.0
    %1145 = vmatpush.msra.mxu0 0.0
    %1146 = vmatpush.msra.mxu0 0.0
    %1147 = vmatpush.msra.mxu0 %v1073
    %1148 = vmatpush.msra.mxu0 %v1070
    %1149 = vmatpush.msra.mxu0 %v1067
    %1150 = vmatpush.msra.mxu0 %v1064
    %1151 = vmatmul.f32.gmra.mxu0 %v1084
    %v1152 = vpop.f32.mrf.mxu0
    %v1153 = vadd.f32 %v1079, %v1152
    %1154 = vmatmul.f32.gmra.mxu0 %v1087
    %v1155 = vpop.f32.mrf.mxu0
    %v1156 = vadd.f32 %v1079, %v1155
    %1157 = vdwg.mxu0
    %v1159 = vsel %vm283, %v1107, 0
    %v1162 = vsel %vm283, %v1130, 0
    %1164 = vmatpush.xpose.msra.mxu0 0.0
    %1165 = vmatpush.xpose.msra.mxu0 0.0
    %1166 = vmatpush.xpose.msra.mxu0 0.0
    %1167 = vmatpush.xpose.msra.mxu0 0.0
    %1168 = vmatpush.xpose.msra.mxu0 0.0
    %1169 = vmatpush.xpose.msra.mxu0 0.0
    %1170 = vmatpush.xpose.msra.mxu0 0.0
    %1171 = vmatpush.xpose.msra.mxu0 0.0
    %1172 = vmatpush.xpose.msra.mxu0 0.0
    %1173 = vmatpush.xpose.msra.mxu0 0.0
    %1174 = vmatpush.xpose.msra.mxu0 0.0
    %1175 = vmatpush.xpose.msra.mxu0 0.0
    %1176 = vmatpush.xpose.msra.mxu0 0.0
    %1177 = vmatpush.xpose.msra.mxu0 0.0
    %1178 = vmatpush.xpose.msra.mxu0 0.0
    %1179 = vmatpush.xpose.msra.mxu0 %v1162
    %1180 = vmatmul.f32.gmra.mxu0 %v1159
    %v1181 = vpop.f32.mrf.mxu0
    %v1182 = vadd.f32 0.0, %v1181
    %1183 = vdwg.mxu0
    %v1185 = vsel %vm283, %v1110, 0
    %v1188 = vsel %vm283, %v1133, 0
    %1190 = vmatpush.xpose.msra.mxu0 0.0
    %1191 = vmatpush.xpose.msra.mxu0 0.0
    %1192 = vmatpush.xpose.msra.mxu0 0.0
    %1193 = vmatpush.xpose.msra.mxu0 0.0
    %1194 = vmatpush.xpose.msra.mxu0 0.0
    %1195 = vmatpush.xpose.msra.mxu0 0.0
    %1196 = vmatpush.xpose.msra.mxu0 0.0
    %1197 = vmatpush.xpose.msra.mxu0 0.0
    %1198 = vmatpush.xpose.msra.mxu0 0.0
    %1199 = vmatpush.xpose.msra.mxu0 0.0
    %1200 = vmatpush.xpose.msra.mxu0 0.0
    %1201 = vmatpush.xpose.msra.mxu0 0.0
    %1202 = vmatpush.xpose.msra.mxu0 0.0
    %1203 = vmatpush.xpose.msra.mxu0 0.0
    %1204 = vmatpush.xpose.msra.mxu0 0.0
    %1205 = vmatpush.xpose.msra.mxu0 %v1188
    %1206 = vmatmul.f32.gmra.mxu0 %v1185
    %v1207 = vpop.f32.mrf.mxu0
    %v1208 = vadd.f32 0.0, %v1207
    %1209 = vdwg.mxu0
    %v1210 = vsel %vm283, %v1182, -inf
    %1211 = vmax.xlane.f32.xlu0 %v1210
    %v1212 = vpop.xlane.xlu0 %1211
    %v1213 = vsel %vm283, %v1208, -inf
    %1214 = vmax.xlane.f32.xlu0 %v1213
    %v1215 = vpop.xlane.xlu0 %1214
    %v1216 = vsub.f32 %v1182, %v1212
    %v1217 = vsub.f32 %v1208, %v1215
    %v1218 = vmul.f32 %v1216, 1.442695
    %v1219 = vpow.pop %v1218
    %v1220 = vmul.f32 %v1217, 1.442695
    %v1221 = vpow.pop %v1220
    %v1222 = vsel %vm283, %v1219, 0.0
    %1223 = vadd.xlane.f32.xlu0 %v1222
    %v1224 = vpop.xlane.xlu0 %1223
    %v1225 = vsel %vm283, %v1221, 0.0
    %1226 = vadd.xlane.f32.xlu0 %v1225
    %v1227 = vpop.xlane.xlu0 %1226
    %v1228 = vrcp.pop %v1224
    %v1229 = vrcp.pop %v1227
    %v1230 = vmul.f32 %v1219, %v1228
    %v1231 = vmul.f32 %v1221, %v1229
    %v1233 = vsel %vm283, %v1230, 0
    %1235 = vmatpush.msra.mxu0 0.0
    %1236 = vmatpush.msra.mxu0 0.0
    %1237 = vmatpush.msra.mxu0 0.0
    %1238 = vmatpush.msra.mxu0 0.0
    %1239 = vmatpush.msra.mxu0 0.0
    %1240 = vmatpush.msra.mxu0 0.0
    %1241 = vmatpush.msra.mxu0 0.0
    %1242 = vmatpush.msra.mxu0 0.0
    %1243 = vmatpush.msra.mxu0 0.0
    %1244 = vmatpush.msra.mxu0 0.0
    %1245 = vmatpush.msra.mxu0 0.0
    %1246 = vmatpush.msra.mxu0 0.0
    %1247 = vmatpush.msra.mxu0 0.0
    %1248 = vmatpush.msra.mxu0 0.0
    %1249 = vmatpush.msra.mxu0 0.0
    %1250 = vmatpush.msra.mxu0 %v1153
    %1251 = vmatmul.f32.gmra.mxu0 %v1233
    %v1252 = vpop.f32.mrf.mxu0
    %v1253 = vadd.f32 0.0, %v1252
    %1254 = vdwg.mxu0
    %v1256 = vsel %vm283, %v1231, 0
    %1258 = vmatpush.msra.mxu0 0.0
    %1259 = vmatpush.msra.mxu0 0.0
    %1260 = vmatpush.msra.mxu0 0.0
    %1261 = vmatpush.msra.mxu0 0.0
    %1262 = vmatpush.msra.mxu0 0.0
    %1263 = vmatpush.msra.mxu0 0.0
    %1264 = vmatpush.msra.mxu0 0.0
    %1265 = vmatpush.msra.mxu0 0.0
    %1266 = vmatpush.msra.mxu0 0.0
    %1267 = vmatpush.msra.mxu0 0.0
    %1268 = vmatpush.msra.mxu0 0.0
    %1269 = vmatpush.msra.mxu0 0.0
    %1270 = vmatpush.msra.mxu0 0.0
    %1271 = vmatpush.msra.mxu0 0.0
    %1272 = vmatpush.msra.mxu0 0.0
    %1273 = vmatpush.msra.mxu0 %v1156
    %1274 = vmatmul.f32.gmra.mxu0 %v1256
    %v1275 = vpop.f32.mrf.mxu0
    %v1276 = vadd.f32 0.0, %v1275
    %1277 = vdwg.mxu0
    %1278 = vrot.lane.b32.xlu0 %v1107, 120
    %v1279 = vpop.permute.xlu0 %1278
    %1280 = vrot.lane.b32.xlu0 %v1130, 120
    %v1281 = vpop.permute.xlu0 %1280
    %v1282 = vsel %vm283, %v1279, 0
    %v1284 = vsel %vm283, %v1281, 0
    %1286 = vmatpush.xpose.msra.mxu0 0.0
    %1287 = vmatpush.xpose.msra.mxu0 0.0
    %1288 = vmatpush.xpose.msra.mxu0 0.0
    %1289 = vmatpush.xpose.msra.mxu0 0.0
    %1290 = vmatpush.xpose.msra.mxu0 0.0
    %1291 = vmatpush.xpose.msra.mxu0 0.0
    %1292 = vmatpush.xpose.msra.mxu0 0.0
    %1293 = vmatpush.xpose.msra.mxu0 0.0
    %1294 = vmatpush.xpose.msra.mxu0 0.0
    %1295 = vmatpush.xpose.msra.mxu0 0.0
    %1296 = vmatpush.xpose.msra.mxu0 0.0
    %1297 = vmatpush.xpose.msra.mxu0 0.0
    %1298 = vmatpush.xpose.msra.mxu0 0.0
    %1299 = vmatpush.xpose.msra.mxu0 0.0
    %1300 = vmatpush.xpose.msra.mxu0 0.0
    %1301 = vmatpush.xpose.msra.mxu0 %v1284
    %1302 = vmatmul.f32.gmra.mxu0 %v1282
    %v1303 = vpop.f32.mrf.mxu0
    %v1304 = vadd.f32 0.0, %v1303
    %1305 = vdwg.mxu0
    %1306 = vrot.lane.b32.xlu0 %v1110, 120
    %v1307 = vpop.permute.xlu0 %1306
    %1308 = vrot.lane.b32.xlu0 %v1133, 120
    %v1309 = vpop.permute.xlu0 %1308
    %v1310 = vsel %vm283, %v1307, 0
    %v1312 = vsel %vm283, %v1309, 0
    %1314 = vmatpush.xpose.msra.mxu0 0.0
    %1315 = vmatpush.xpose.msra.mxu0 0.0
    %1316 = vmatpush.xpose.msra.mxu0 0.0
    %1317 = vmatpush.xpose.msra.mxu0 0.0
    %1318 = vmatpush.xpose.msra.mxu0 0.0
    %1319 = vmatpush.xpose.msra.mxu0 0.0
    %1320 = vmatpush.xpose.msra.mxu0 0.0
    %1321 = vmatpush.xpose.msra.mxu0 0.0
    %1322 = vmatpush.xpose.msra.mxu0 0.0
    %1323 = vmatpush.xpose.msra.mxu0 0.0
    %1324 = vmatpush.xpose.msra.mxu0 0.0
    %1325 = vmatpush.xpose.msra.mxu0 0.0
    %1326 = vmatpush.xpose.msra.mxu0 0.0
    %1327 = vmatpush.xpose.msra.mxu0 0.0
    %1328 = vmatpush.xpose.msra.mxu0 0.0
    %1329 = vmatpush.xpose.msra.mxu0 %v1312
    %1330 = vmatmul.f32.gmra.mxu0 %v1310
    %v1331 = vpop.f32.mrf.mxu0
    %v1332 = vadd.f32 0.0, %v1331
    %1333 = vdwg.mxu0
    %v1334 = vsel %vm283, %v1304, -inf
    %1335 = vmax.xlane.f32.xlu0 %v1334
    %v1336 = vpop.xlane.xlu0 %1335
    %v1337 = vsel %vm283, %v1332, -inf
    %1338 = vmax.xlane.f32.xlu0 %v1337
    %v1339 = vpop.xlane.xlu0 %1338
    %v1340 = vsub.f32 %v1304, %v1336
    %v1341 = vsub.f32 %v1332, %v1339
    %v1342 = vmul.f32 %v1340, 1.442695
    %v1343 = vpow.pop %v1342
    %v1344 = vmul.f32 %v1341, 1.442695
    %v1345 = vpow.pop %v1344
    %v1346 = vsel %vm283, %v1343, 0.0
    %1347 = vadd.xlane.f32.xlu0 %v1346
    %v1348 = vpop.xlane.xlu0 %1347
    %v1349 = vsel %vm283, %v1345, 0.0
    %1350 = vadd.xlane.f32.xlu0 %v1349
    %v1351 = vpop.xlane.xlu0 %1350
    %v1352 = vrcp.pop %v1348
    %v1353 = vrcp.pop %v1351
    %v1354 = vmul.f32 %v1343, %v1352
    %v1355 = vmul.f32 %v1345, %v1353
    %1357 = vrot.lane.b32.xlu0 %v1153, 120
    %v1358 = vpop.permute.xlu0 %1357
    %v1361 = vsel %vm283, %v1354, 0
    %1363 = vmatpush.msra.mxu0 0.0
    %1364 = vmatpush.msra.mxu0 0.0
    %1365 = vmatpush.msra.mxu0 0.0
    %1366 = vmatpush.msra.mxu0 0.0
    %1367 = vmatpush.msra.mxu0 0.0
    %1368 = vmatpush.msra.mxu0 0.0
    %1369 = vmatpush.msra.mxu0 0.0
    %1370 = vmatpush.msra.mxu0 0.0
    %1371 = vmatpush.msra.mxu0 0.0
    %1372 = vmatpush.msra.mxu0 0.0
    %1373 = vmatpush.msra.mxu0 0.0
    %1374 = vmatpush.msra.mxu0 0.0
    %1375 = vmatpush.msra.mxu0 0.0
    %1376 = vmatpush.msra.mxu0 0.0
    %1377 = vmatpush.msra.mxu0 0.0
    %1378 = vmatpush.msra.mxu0 %v1358
    %1379 = vmatmul.f32.gmra.mxu0 %v1361
    %v1380 = vpop.f32.mrf.mxu0
    %v1381 = vadd.f32 0.0, %v1380
    %1382 = vdwg.mxu0
    %1384 = vrot.lane.b32.xlu0 %v1156, 120
    %v1385 = vpop.permute.xlu0 %1384
    %v1388 = vsel %vm283, %v1355, 0
    %1390 = vmatpush.msra.mxu0 0.0
    %1391 = vmatpush.msra.mxu0 0.0
    %1392 = vmatpush.msra.mxu0 0.0
    %1393 = vmatpush.msra.mxu0 0.0
    %1394 = vmatpush.msra.mxu0 0.0
    %1395 = vmatpush.msra.mxu0 0.0
    %1396 = vmatpush.msra.mxu0 0.0
    %1397 = vmatpush.msra.mxu0 0.0
    %1398 = vmatpush.msra.mxu0 0.0
    %1399 = vmatpush.msra.mxu0 0.0
    %1400 = vmatpush.msra.mxu0 0.0
    %1401 = vmatpush.msra.mxu0 0.0
    %1402 = vmatpush.msra.mxu0 0.0
    %1403 = vmatpush.msra.mxu0 0.0
    %1404 = vmatpush.msra.mxu0 0.0
    %1405 = vmatpush.msra.mxu0 %v1385
    %1406 = vmatmul.f32.gmra.mxu0 %v1388
    %v1407 = vpop.f32.mrf.mxu0
    %v1408 = vadd.f32 0.0, %v1407
    %1409 = vdwg.mxu0
    %1410 = vrot.lane.b32.xlu0 %v1107, 112
    %v1411 = vpop.permute.xlu0 %1410
    %1412 = vrot.lane.b32.xlu0 %v1130, 112
    %v1413 = vpop.permute.xlu0 %1412
    %v1414 = vsel %vm283, %v1411, 0
    %v1416 = vsel %vm283, %v1413, 0
    %1418 = vmatpush.xpose.msra.mxu0 0.0
    %1419 = vmatpush.xpose.msra.mxu0 0.0
    %1420 = vmatpush.xpose.msra.mxu0 0.0
    %1421 = vmatpush.xpose.msra.mxu0 0.0
    %1422 = vmatpush.xpose.msra.mxu0 0.0
    %1423 = vmatpush.xpose.msra.mxu0 0.0
    %1424 = vmatpush.xpose.msra.mxu0 0.0
    %1425 = vmatpush.xpose.msra.mxu0 0.0
    %1426 = vmatpush.xpose.msra.mxu0 0.0
    %1427 = vmatpush.xpose.msra.mxu0 0.0
    %1428 = vmatpush.xpose.msra.mxu0 0.0
    %1429 = vmatpush.xpose.msra.mxu0 0.0
    %1430 = vmatpush.xpose.msra.mxu0 0.0
    %1431 = vmatpush.xpose.msra.mxu0 0.0
    %1432 = vmatpush.xpose.msra.mxu0 0.0
    %1433 = vmatpush.xpose.msra.mxu0 %v1416
    %1434 = vmatmul.f32.gmra.mxu0 %v1414
    %v1435 = vpop.f32.mrf.mxu0
    %v1436 = vadd.f32 0.0, %v1435
    %1437 = vdwg.mxu0
    %1438 = vrot.lane.b32.xlu0 %v1110, 112
    %v1439 = vpop.permute.xlu0 %1438
    %1440 = vrot.lane.b32.xlu0 %v1133, 112
    %v1441 = vpop.permute.xlu0 %1440
    %v1442 = vsel %vm283, %v1439, 0
    %v1444 = vsel %vm283, %v1441, 0
    %1446 = vmatpush.xpose.msra.mxu0 0.0
    %1447 = vmatpush.xpose.msra.mxu0 0.0
    %1448 = vmatpush.xpose.msra.mxu0 0.0
    %1449 = vmatpush.xpose.msra.mxu0 0.0
    %1450 = vmatpush.xpose.msra.mxu0 0.0
    %1451 = vmatpush.xpose.msra.mxu0 0.0
    %1452 = vmatpush.xpose.msra.mxu0 0.0
    %1453 = vmatpush.xpose.msra.mxu0 0.0
    %1454 = vmatpush.xpose.msra.mxu0 0.0
    %1455 = vmatpush.xpose.msra.mxu0 0.0
    %1456 = vmatpush.xpose.msra.mxu0 0.0
    %1457 = vmatpush.xpose.msra.mxu0 0.0
    %1458 = vmatpush.xpose.msra.mxu0 0.0
    %1459 = vmatpush.xpose.msra.mxu0 0.0
    %1460 = vmatpush.xpose.msra.mxu0 0.0
    %1461 = vmatpush.xpose.msra.mxu0 %v1444
    %1462 = vmatmul.f32.gmra.mxu0 %v1442
    %v1463 = vpop.f32.mrf.mxu0
    %v1464 = vadd.f32 0.0, %v1463
    %1465 = vdwg.mxu0
    %v1466 = vsel %vm283, %v1436, -inf
    %1467 = vmax.xlane.f32.xlu0 %v1466
    %v1468 = vpop.xlane.xlu0 %1467
    %v1469 = vsel %vm283, %v1464, -inf
    %1470 = vmax.xlane.f32.xlu0 %v1469
    %v1471 = vpop.xlane.xlu0 %1470
    %v1472 = vsub.f32 %v1436, %v1468
    %v1473 = vsub.f32 %v1464, %v1471
    %v1474 = vmul.f32 %v1472, 1.442695
    %v1475 = vpow.pop %v1474
    %v1476 = vmul.f32 %v1473, 1.442695
    %v1477 = vpow.pop %v1476
    %v1478 = vsel %vm283, %v1475, 0.0
    %1479 = vadd.xlane.f32.xlu0 %v1478
    %v1480 = vpop.xlane.xlu0 %1479
    %v1481 = vsel %vm283, %v1477, 0.0
    %1482 = vadd.xlane.f32.xlu0 %v1481
    %v1483 = vpop.xlane.xlu0 %1482
    %v1484 = vrcp.pop %v1480
    %v1485 = vrcp.pop %v1483
    %v1486 = vmul.f32 %v1475, %v1484
    %v1487 = vmul.f32 %v1477, %v1485
    %1488 = vrot.lane.b32.xlu0 %v1153, 112
    %v1489 = vpop.permute.xlu0 %1488
    %v1492 = vsel %vm283, %v1486, 0
    %1494 = vmatpush.msra.mxu0 0.0
    %1495 = vmatpush.msra.mxu0 0.0
    %1496 = vmatpush.msra.mxu0 0.0
    %1497 = vmatpush.msra.mxu0 0.0
    %1498 = vmatpush.msra.mxu0 0.0
    %1499 = vmatpush.msra.mxu0 0.0
    %1500 = vmatpush.msra.mxu0 0.0
    %1501 = vmatpush.msra.mxu0 0.0
    %1502 = vmatpush.msra.mxu0 0.0
    %1503 = vmatpush.msra.mxu0 0.0
    %1504 = vmatpush.msra.mxu0 0.0
    %1505 = vmatpush.msra.mxu0 0.0
    %1506 = vmatpush.msra.mxu0 0.0
    %1507 = vmatpush.msra.mxu0 0.0
    %1508 = vmatpush.msra.mxu0 0.0
    %1509 = vmatpush.msra.mxu0 %v1489
    %1510 = vmatmul.f32.gmra.mxu0 %v1492
    %v1511 = vpop.f32.mrf.mxu0
    %v1512 = vadd.f32 0.0, %v1511
    %1513 = vdwg.mxu0
    %1514 = vrot.lane.b32.xlu0 %v1156, 112
    %v1515 = vpop.permute.xlu0 %1514
    %v1518 = vsel %vm283, %v1487, 0
    %1520 = vmatpush.msra.mxu0 0.0
    %1521 = vmatpush.msra.mxu0 0.0
    %1522 = vmatpush.msra.mxu0 0.0
    %1523 = vmatpush.msra.mxu0 0.0
    %1524 = vmatpush.msra.mxu0 0.0
    %1525 = vmatpush.msra.mxu0 0.0
    %1526 = vmatpush.msra.mxu0 0.0
    %1527 = vmatpush.msra.mxu0 0.0
    %1528 = vmatpush.msra.mxu0 0.0
    %1529 = vmatpush.msra.mxu0 0.0
    %1530 = vmatpush.msra.mxu0 0.0
    %1531 = vmatpush.msra.mxu0 0.0
    %1532 = vmatpush.msra.mxu0 0.0
    %1533 = vmatpush.msra.mxu0 0.0
    %1534 = vmatpush.msra.mxu0 0.0
    %1535 = vmatpush.msra.mxu0 %v1515
    %1536 = vmatmul.f32.gmra.mxu0 %v1518
    %v1537 = vpop.f32.mrf.mxu0
    %v1538 = vadd.f32 0.0, %v1537
    %1539 = vdwg.mxu0
    %1540 = vrot.lane.b32.xlu0 %v1107, 104
    %v1541 = vpop.permute.xlu0 %1540
    %1542 = vrot.lane.b32.xlu0 %v1130, 104
    %v1543 = vpop.permute.xlu0 %1542
    %v1544 = vsel %vm283, %v1541, 0
    %v1546 = vsel %vm283, %v1543, 0
    %1548 = vmatpush.xpose.msra.mxu0 0.0
    %1549 = vmatpush.xpose.msra.mxu0 0.0
    %1550 = vmatpush.xpose.msra.mxu0 0.0
    %1551 = vmatpush.xpose.msra.mxu0 0.0
    %1552 = vmatpush.xpose.msra.mxu0 0.0
    %1553 = vmatpush.xpose.msra.mxu0 0.0
    %1554 = vmatpush.xpose.msra.mxu0 0.0
    %1555 = vmatpush.xpose.msra.mxu0 0.0
    %1556 = vmatpush.xpose.msra.mxu0 0.0
    %1557 = vmatpush.xpose.msra.mxu0 0.0
    %1558 = vmatpush.xpose.msra.mxu0 0.0
    %1559 = vmatpush.xpose.msra.mxu0 0.0
    %1560 = vmatpush.xpose.msra.mxu0 0.0
    %1561 = vmatpush.xpose.msra.mxu0 0.0
    %1562 = vmatpush.xpose.msra.mxu0 0.0
    %1563 = vmatpush.xpose.msra.mxu0 %v1546
    %1564 = vmatmul.f32.gmra.mxu0 %v1544
    %v1565 = vpop.f32.mrf.mxu0
    %v1566 = vadd.f32 0.0, %v1565
    %1567 = vdwg.mxu0
    %1568 = vrot.lane.b32.xlu0 %v1110, 104
    %v1569 = vpop.permute.xlu0 %1568
    %1570 = vrot.lane.b32.xlu0 %v1133, 104
    %v1571 = vpop.permute.xlu0 %1570
    %v1572 = vsel %vm283, %v1569, 0
    %v1574 = vsel %vm283, %v1571, 0
    %1576 = vmatpush.xpose.msra.mxu0 0.0
    %1577 = vmatpush.xpose.msra.mxu0 0.0
    %1578 = vmatpush.xpose.msra.mxu0 0.0
    %1579 = vmatpush.xpose.msra.mxu0 0.0
    %1580 = vmatpush.xpose.msra.mxu0 0.0
    %1581 = vmatpush.xpose.msra.mxu0 0.0
    %1582 = vmatpush.xpose.msra.mxu0 0.0
    %1583 = vmatpush.xpose.msra.mxu0 0.0
    %1584 = vmatpush.xpose.msra.mxu0 0.0
    %1585 = vmatpush.xpose.msra.mxu0 0.0
    %1586 = vmatpush.xpose.msra.mxu0 0.0
    %1587 = vmatpush.xpose.msra.mxu0 0.0
    %1588 = vmatpush.xpose.msra.mxu0 0.0
    %1589 = vmatpush.xpose.msra.mxu0 0.0
    %1590 = vmatpush.xpose.msra.mxu0 0.0
    %1591 = vmatpush.xpose.msra.mxu0 %v1574
    %1592 = vmatmul.f32.gmra.mxu0 %v1572
    %v1593 = vpop.f32.mrf.mxu0
    %v1594 = vadd.f32 0.0, %v1593
    %1595 = vdwg.mxu0
    %v1596 = vsel %vm283, %v1566, -inf
    %1597 = vmax.xlane.f32.xlu0 %v1596
    %v1598 = vpop.xlane.xlu0 %1597
    %v1599 = vsel %vm283, %v1594, -inf
    %1600 = vmax.xlane.f32.xlu0 %v1599
    %v1601 = vpop.xlane.xlu0 %1600
    %v1602 = vsub.f32 %v1566, %v1598
    %v1603 = vsub.f32 %v1594, %v1601
    %v1604 = vmul.f32 %v1602, 1.442695
    %v1605 = vpow.pop %v1604
    %v1606 = vmul.f32 %v1603, 1.442695
    %v1607 = vpow.pop %v1606
    %v1608 = vsel %vm283, %v1605, 0.0
    %1609 = vadd.xlane.f32.xlu0 %v1608
    %v1610 = vpop.xlane.xlu0 %1609
    %v1611 = vsel %vm283, %v1607, 0.0
    %1612 = vadd.xlane.f32.xlu0 %v1611
    %v1613 = vpop.xlane.xlu0 %1612
    %v1614 = vrcp.pop %v1610
    %v1615 = vrcp.pop %v1613
    %v1616 = vmul.f32 %v1605, %v1614
    %v1617 = vmul.f32 %v1607, %v1615
    %1618 = vrot.lane.b32.xlu0 %v1153, 104
    %v1619 = vpop.permute.xlu0 %1618
    %v1622 = vsel %vm283, %v1616, 0
    %1624 = vmatpush.msra.mxu0 0.0
    %1625 = vmatpush.msra.mxu0 0.0
    %1626 = vmatpush.msra.mxu0 0.0
    %1627 = vmatpush.msra.mxu0 0.0
    %1628 = vmatpush.msra.mxu0 0.0
    %1629 = vmatpush.msra.mxu0 0.0
    %1630 = vmatpush.msra.mxu0 0.0
    %1631 = vmatpush.msra.mxu0 0.0
    %1632 = vmatpush.msra.mxu0 0.0
    %1633 = vmatpush.msra.mxu0 0.0
    %1634 = vmatpush.msra.mxu0 0.0
    %1635 = vmatpush.msra.mxu0 0.0
    %1636 = vmatpush.msra.mxu0 0.0
    %1637 = vmatpush.msra.mxu0 0.0
    %1638 = vmatpush.msra.mxu0 0.0
    %1639 = vmatpush.msra.mxu0 %v1619
    %1640 = vmatmul.f32.gmra.mxu0 %v1622
    %v1641 = vpop.f32.mrf.mxu0
    %v1642 = vadd.f32 0.0, %v1641
    %1643 = vdwg.mxu0
    %1644 = vrot.lane.b32.xlu0 %v1156, 104
    %v1645 = vpop.permute.xlu0 %1644
    %v1648 = vsel %vm283, %v1617, 0
    %1650 = vmatpush.msra.mxu0 0.0
    %1651 = vmatpush.msra.mxu0 0.0
    %1652 = vmatpush.msra.mxu0 0.0
    %1653 = vmatpush.msra.mxu0 0.0
    %1654 = vmatpush.msra.mxu0 0.0
    %1655 = vmatpush.msra.mxu0 0.0
    %1656 = vmatpush.msra.mxu0 0.0
    %1657 = vmatpush.msra.mxu0 0.0
    %1658 = vmatpush.msra.mxu0 0.0
    %1659 = vmatpush.msra.mxu0 0.0
    %1660 = vmatpush.msra.mxu0 0.0
    %1661 = vmatpush.msra.mxu0 0.0
    %1662 = vmatpush.msra.mxu0 0.0
    %1663 = vmatpush.msra.mxu0 0.0
    %1664 = vmatpush.msra.mxu0 0.0
    %1665 = vmatpush.msra.mxu0 %v1645
    %1666 = vmatmul.f32.gmra.mxu0 %v1648
    %v1667 = vpop.f32.mrf.mxu0
    %v1668 = vadd.f32 0.0, %v1667
    %1669 = vdwg.mxu0
    %1672 = vrot.lane.b32.xlu0 %v1381, 8
    %v1673 = vpop.permute.xlu0 %1672
    %1674 = vrot.lane.b32.xlu0 %v1408, 8
    %v1675 = vpop.permute.xlu0 %1674
    %1680 = vrot.lane.b32.xlu0 %v1512, 16
    %v1681 = vpop.permute.xlu0 %1680
    %1682 = vrot.lane.b32.xlu0 %v1538, 16
    %v1683 = vpop.permute.xlu0 %1682
    %1688 = vrot.lane.b32.xlu0 %v1642, 24
    %v1689 = vpop.permute.xlu0 %1688
    %1690 = vrot.lane.b32.xlu0 %v1668, 24
    %v1691 = vpop.permute.xlu0 %1690
    %v1694 = vsel %vm283, %v1253, %v1673
    %v1695 = vsel %vm283, %v1276, %v1675
    %v1696 = vsel %vm822, %v1694, %v1681
    %v1697 = vsel %vm822, %v1695, %v1683
    %v1698 = vsel %vm825, %v1696, %v1689
    %v1699 = vsel %vm825, %v1697, %v1691
    %v1700 = vld [vmem:[#allocation2 + $0x19] ss:$0 sm:$0xff]
    %v1702 = vsel %vm207, %v1698, 0
    %v1705 = vsel %vm207, %v1699, 0
    %1707 = vmatpush.msra.mxu0 0.0
    %1708 = vmatpush.msra.mxu0 0.0
    %1709 = vmatpush.msra.mxu0 0.0
    %1710 = vmatpush.msra.mxu0 0.0
    %1711 = vmatpush.msra.mxu0 0.0
    %1712 = vmatpush.msra.mxu0 0.0
    %1713 = vmatpush.msra.mxu0 0.0
    %1714 = vmatpush.msra.mxu0 0.0
    %1715 = vmatpush.msra.mxu0 0.0
    %1716 = vmatpush.msra.mxu0 0.0
    %1717 = vmatpush.msra.mxu0 0.0
    %1718 = vmatpush.msra.mxu0 0.0
    %1719 = vmatpush.msra.mxu0 %v1059
    %1720 = vmatpush.msra.mxu0 %v1057
    %1721 = vmatpush.msra.mxu0 %v1055
    %1722 = vmatpush.msra.mxu0 %v1053
    %1723 = vmatmul.f32.gmra.mxu0 %v1702
    %v1724 = vpop.f32.mrf.mxu0
    %v1725 = vadd.f32 %v1700, %v1724
    %1726 = vmatmul.f32.gmra.mxu0 %v1705
    %v1727 = vpop.f32.mrf.mxu0
    %v1728 = vadd.f32 %v1700, %v1727
    %1729 = vdwg.mxu0
    %v1730 = vadd.f32 %v1050, %v1725
    %v1731 = vadd.f32 %v1051, %v1728
    %v1732 = vld [vmem:[#allocation2 + $0x1a] ss:$0 sm:$0xff]
    %v1733 = vld [vmem:[#allocation2 + $0x1b] ss:$0 sm:$0xff]
    %v1734 = vsel %vm207, %v1730, 0.0
    %1735 = vadd.xlane.f32.xlu0 %v1734
    %v1736 = vpop.xlane.xlu0 %1735
    %v1737 = vsel %vm207, %v1731, 0.0
    %1738 = vadd.xlane.f32.xlu0 %v1737
    %v1739 = vpop.xlane.xlu0 %1738
    %v1740 = vmul.f32 %v1736, %v874
    %v1741 = vmul.f32 %v1739, %v874
    %v1742 = vmul.f32 %v1730, %v1730
    %v1743 = vmul.f32 %v1731, %v1731
    %v1744 = vsel %vm207, %v1742, 0.0
    %1745 = vadd.xlane.f32.xlu0 %v1744
    %v1746 = vpop.xlane.xlu0 %1745
    %v1747 = vsel %vm207, %v1743, 0.0
    %1748 = vadd.xlane.f32.xlu0 %v1747
    %v1749 = vpop.xlane.xlu0 %1748
    %v1750 = vmul.f32 %v1746, %v874
    %v1751 = vmul.f32 %v1749, %v874
    %v1752 = vmul.f32 %v1740, %v1740
    %v1753 = vmul.f32 %v1741, %v1741
    %v1754 = vsub.f32 %v1750, %v1752
    %v1755 = vsub.f32 %v1751, %v1753
    %v1756 = vadd.f32 %v1754, 1e-05
    %v1757 = vadd.f32 %v1755, 1e-05
    %v1758 = vrsqrt.pop %v1756
    %v1759 = vmul.f32 %v1758, %v1756
    %v1760 = vmul.f32 %v1759, %v1758
    %v1761 = vmul.f32 0.5, %v1760
    %v1762 = vsub.f32 1.5, %v1761
    %v1763 = vmul.f32 %v1758, %v1762
    %vm1764 = vweird.f32 %v1756
    %vm1765 = vweird.f32 %v1758
    %vm1766 = vmor %vm1764, %vm1765
    %v1767 = vsel %vm1766, %v1758, %v1763
    %v1768 = vrsqrt.pop %v1757
    %v1769 = vmul.f32 %v1768, %v1757
    %v1770 = vmul.f32 %v1769, %v1768
    %v1771 = vmul.f32 0.5, %v1770
    %v1772 = vsub.f32 1.5, %v1771
    %v1773 = vmul.f32 %v1768, %v1772
    %vm1774 = vweird.f32 %v1757
    %vm1775 = vweird.f32 %v1768
    %vm1776 = vmor %vm1774, %vm1775
    %v1777 = vsel %vm1776, %v1768, %v1773
    %v1778 = vmul.f32 %v1732, %v1767
    %v1779 = vmul.f32 %v1732, %v1777
    %v1780 = vmul.f32 %v1730, %v1778
    %v1781 = vmul.f32 %v1731, %v1779
    %v1782 = vmul.f32 %v1740, %v1778
    %v1783 = vmul.f32 %v1741, %v1779
    %v1784 = vsub.f32 %v1733, %v1782
    %v1785 = vsub.f32 %v1733, %v1783
    %v1786 = vadd.f32 %v1780, %v1784
    %v1787 = vadd.f32 %v1781, %v1785
    %v1788 = vld [vmem:[#allocation2 + $0x1c] ss:$0 sm:$0xff]
    %v1790 = vsel %vm207, %v1786, 0
    %v1793 = vsel %vm207, %v1787, 0
    %1795 = vmatpush.msra.mxu0 0.0
    %1796 = vmatpush.msra.mxu0 0.0
    %1797 = vmatpush.msra.mxu0 0.0
    %1798 = vmatpush.msra.mxu0 0.0
    %1799 = vmatpush.msra.mxu0 0.0
    %1800 = vmatpush.msra.mxu0 0.0
    %1801 = vmatpush.msra.mxu0 0.0
    %1802 = vmatpush.msra.mxu0 0.0
    %1803 = vmatpush.msra.mxu0 0.0
    %1804 = vmatpush.msra.mxu0 0.0
    %1805 = vmatpush.msra.mxu0 0.0
    %1806 = vmatpush.msra.mxu0 0.0
    %1807 = vmatpush.msra.mxu0 %v1060
    %1808 = vmatpush.msra.mxu0 %v1058
    %1809 = vmatpush.msra.mxu0 %v1056
    %1810 = vmatpush.msra.mxu0 %v1054
    %1811 = vmatmul.f32.gmra.mxu0 %v1790
    %v1812 = vpop.f32.mrf.mxu0
    %v1813 = vadd.f32 %v1788, %v1812
    %1814 = vmatmul.f32.gmra.mxu0 %v1793
    %v1815 = vpop.f32.mrf.mxu0
    %v1816 = vadd.f32 %v1788, %v1815
    %1817 = vdwg.mxu0
    %v1818 = vmax.f32 %v1813, 0.0
    %v1819 = vmax.f32 %v1816, 0.0
    %s1820 = scalar_lea.vmem %s6, 64
    %v1821 = vld [vmem:[%s1820] sm:$0xff]
    %v1822 = vld [vmem:[%s1820 + $0x8] sm:$0xff]
    %v1823 = vld [vmem:[%s1820 + $0x10] sm:$0xff]
    %v1824 = vld [vmem:[%s1820 + $0x18] sm:$0xff]
    %v1825 = vld [vmem:[%s1820 + $0x20] sm:$0xff]
    %v1826 = vld [vmem:[%s1820 + $0x28] sm:$0xff]
    %v1827 = vld [vmem:[%s1820 + $0x30] sm:$0xff]
    %v1828 = vld [vmem:[%s1820 + $0x38] sm:$0xff]
    %v1829 = vld [vmem:[#allocation2 + $0x1d] ss:$0 sm:$0xff]
    %v1831 = vsel %vm964, %v1818, 0
    %v1834 = vsel %vm964, %v1819, 0
    %1836 = vmatpush.msra.mxu0 0.0
    %1837 = vmatpush.msra.mxu0 0.0
    %1838 = vmatpush.msra.mxu0 0.0
    %1839 = vmatpush.msra.mxu0 0.0
    %1840 = vmatpush.msra.mxu0 0.0
    %1841 = vmatpush.msra.mxu0 0.0
    %1842 = vmatpush.msra.mxu0 0.0
    %1843 = vmatpush.msra.mxu0 0.0
    %1844 = vmatpush.msra.mxu0 %v1828
    %1845 = vmatpush.msra.mxu0 %v1827
    %1846 = vmatpush.msra.mxu0 %v1826
    %1847 = vmatpush.msra.mxu0 %v1825
    %1848 = vmatpush.msra.mxu0 %v1824
    %1849 = vmatpush.msra.mxu0 %v1823
    %1850 = vmatpush.msra.mxu0 %v1822
    %1851 = vmatpush.msra.mxu0 %v1821
    %1852 = vmatmul.f32.gmra.mxu0 %v1831
    %v1853 = vpop.f32.mrf.mxu0
    %v1854 = vadd.f32 %v1829, %v1853
    %1855 = vmatmul.f32.gmra.mxu0 %v1834
    %v1856 = vpop.f32.mrf.mxu0
    %v1857 = vadd.f32 %v1829, %v1856
    %1858 = vdwg.mxu0
    %v1859 = vadd.f32 %v1786, %v1854
    %v1860 = vadd.f32 %v1787, %v1857
    %v1861 = vld [vmem:[#allocation2 + $0x1e] ss:$0 sm:$0xff]
    %v1862 = vld [vmem:[#allocation2 + $0x1f] ss:$0 sm:$0xff]
    %v1863 = vsel %vm207, %v1859, 0.0
    %1864 = vadd.xlane.f32.xlu0 %v1863
    %v1865 = vpop.xlane.xlu0 %1864
    %v1866 = vsel %vm207, %v1860, 0.0
    %1867 = vadd.xlane.f32.xlu0 %v1866
    %v1868 = vpop.xlane.xlu0 %1867
    %v1869 = vmul.f32 %v1865, %v874
    %v1870 = vmul.f32 %v1868, %v874
    %v1871 = vmul.f32 %v1859, %v1859
    %v1872 = vmul.f32 %v1860, %v1860
    %v1873 = vsel %vm207, %v1871, 0.0
    %1874 = vadd.xlane.f32.xlu0 %v1873
    %v1875 = vpop.xlane.xlu0 %1874
    %v1876 = vsel %vm207, %v1872, 0.0
    %1877 = vadd.xlane.f32.xlu0 %v1876
    %v1878 = vpop.xlane.xlu0 %1877
    %v1879 = vmul.f32 %v1875, %v874
    %v1880 = vmul.f32 %v1878, %v874
    %v1881 = vmul.f32 %v1869, %v1869
    %v1882 = vmul.f32 %v1870, %v1870
    %v1883 = vsub.f32 %v1879, %v1881
    %v1884 = vsub.f32 %v1880, %v1882
    %v1885 = vadd.f32 %v1883, 1e-05
    %v1886 = vadd.f32 %v1884, 1e-05
    %v1887 = vrsqrt.pop %v1885
    %v1888 = vmul.f32 %v1887, %v1885
    %v1889 = vmul.f32 %v1888, %v1887
    %v1890 = vmul.f32 0.5, %v1889
    %v1891 = vsub.f32 1.5, %v1890
    %v1892 = vmul.f32 %v1887, %v1891
    %vm1893 = vweird.f32 %v1885
    %vm1894 = vweird.f32 %v1887
    %vm1895 = vmor %vm1893, %vm1894
    %v1896 = vsel %vm1895, %v1887, %v1892
    %v1897 = vrsqrt.pop %v1886
    %v1898 = vmul.f32 %v1897, %v1886
    %v1899 = vmul.f32 %v1898, %v1897
    %v1900 = vmul.f32 0.5, %v1899
    %v1901 = vsub.f32 1.5, %v1900
    %v1902 = vmul.f32 %v1897, %v1901
    %vm1903 = vweird.f32 %v1886
    %vm1904 = vweird.f32 %v1897
    %vm1905 = vmor %vm1903, %vm1904
    %v1906 = vsel %vm1905, %v1897, %v1902
    %v1907 = vmul.f32 %v1861, %v1896
    %v1908 = vmul.f32 %v1861, %v1906
    %v1909 = vmul.f32 %v1859, %v1907
    %v1910 = vmul.f32 %v1860, %v1908
    %v1911 = vmul.f32 %v1869, %v1907
    %v1912 = vmul.f32 %v1870, %v1908
    %v1913 = vsub.f32 %v1862, %v1911
    %v1914 = vsub.f32 %v1862, %v1912
    %v1915 = vadd.f32 %v1909, %v1913
    %v1916 = vadd.f32 %v1910, %v1914
    %s1917 = scalar_lea.vmem %s6, 128
    %v1918 = vld [vmem:[%s1917] sm:$0xff]
    %v1919 = vld [vmem:[%s1917 + $0x8] sm:$0xff]
    %v1920 = vld [vmem:[%s1917 + $0x10] sm:$0xff]
    %v1921 = vld [vmem:[%s1917 + $0x18] sm:$0xff]
    %v1922 = vld [vmem:[#allocation2 + $0x30] ss:$0 sm:$0xff]
    %v1925 = vrot.slane %v1915, 7
    %v1926 = vrot.slane %v1916, 6
    %vm1927 = vcmask 1041409
    %v1928 = vsel %vm1927, %v1926, %v1925
    %v1929 = vsel %vm207, %v1928, 0
    %1931 = vmatpush.msra.mxu0 0.0
    %1932 = vmatpush.msra.mxu0 0.0
    %1933 = vmatpush.msra.mxu0 0.0
    %1934 = vmatpush.msra.mxu0 0.0
    %1935 = vmatpush.msra.mxu0 0.0
    %1936 = vmatpush.msra.mxu0 0.0
    %1937 = vmatpush.msra.mxu0 0.0
    %1938 = vmatpush.msra.mxu0 0.0
    %1939 = vmatpush.msra.mxu0 0.0
    %1940 = vmatpush.msra.mxu0 0.0
    %1941 = vmatpush.msra.mxu0 0.0
    %1942 = vmatpush.msra.mxu0 0.0
    %1943 = vmatpush.msra.mxu0 %v1921
    %1944 = vmatpush.msra.mxu0 %v1920
    %1945 = vmatpush.msra.mxu0 %v1919
    %1946 = vmatpush.msra.mxu0 %v1918
    %1947 = vmatmul.f32.gmra.mxu0 %v1929
    %v1948 = vpop.f32.mrf.mxu0
    %v1949 = vadd.f32 %v1922, %v1948
    %1950 = vdwg.mxu0
    %vm1951 = vcmask 9216
    %1952 = vst.msk [vmem:[#allocation5] sm:$0x3] %vm1951, %v1949
    // Predicated region
    $region38: #{proformer_forward.1} parent=1 // pred_check
      _
    $region39: #{proformer_forward.1} parent=1 // pred_check_branch
      %1954 = sbr.rel (0) target = $region41
    $region40: #{proformer_forward.1} parent=1 // pred_region
      %1956 = vsyncadd [#allocation4], 0
      %s1958 = sshll.u32 [#allocation5], 4
      %s1959 = int_to_ptr.vmem [resolvable:$true] %s1958
      %s1960 = sshll.u32 %s8, 4
      %s1961 = int_to_ptr.hbm [resolvable:$true] %s1960
      %1963 = dma.vmem_to_hbm [thread:$0]  %s1959, 32, %s1961, [#allocation4]
    $region41: #{proformer_forward.1} parent=1 // pred_fallthru
      _
    // Predicated region
    $region42: #{proformer_forward.1} parent=1 // pred_check
      _
    $region43: #{proformer_forward.1} parent=1 // pred_check_branch
      %1965 = sbr.rel (0) target = $region45
    $region44: #{proformer_forward.1} parent=1 // pred_region
      %1967 = dma.done [#allocation4], 32
    $region45: #{proformer_forward.1} parent=1 // pred_fallthru
      _
    %1968 = vsyncpa [#allocation3], 1
    %1969 = vsyncpa [#allocation4], 1

</llo_original>
